<compile_context>
chip_gen: v6e
topology: v6e:2x2x1
jax: 0.10.0
libtpu: 0.0.40
codegen_flags: <defaults>
</compile_context>

<pallas_src>
import math
import functools

import jax
import jax.numpy as jnp
from jax.experimental import pallas as pl
from jax.experimental.pallas import tpu as pltpu


def _cross_att_kernel(*refs, B, Sq, Sk, num_heads, head_dim, compute_dtype,
                      has_mask, approx_recip):
    if has_mask:
        (x_ref, ctx_ref, mask_ref,
         wq_ref, bq_ref, wkv_ref, bkv_ref,
         wo_ref, bo_ref, lnw_ref, lnb_ref, out_ref) = refs
    else:
        (x_ref, ctx_ref,
         wq_ref, bq_ref, wkv_ref, bkv_ref,
         wo_ref, bo_ref, lnw_ref, lnb_ref, out_ref) = refs
        mask_ref = None

    f32 = jnp.float32
    cdt = compute_dtype
    E = num_heads * head_dim
    scale = 1.0 / math.sqrt(head_dim)

    x = x_ref[...].astype(f32)          # (B*Sq, E) -- kept in f32 for the residual add
    xc = x.astype(cdt)
    cc = ctx_ref[...].astype(cdt)       # (B*Sk, E)

    # Q projection; attention scale folded into q once.
    q = ((jnp.dot(xc, wq_ref[...], preferred_element_type=f32)
          + bq_ref[...]) * scale).astype(cdt)                      # (B*Sq, E)
    # Fused K/V projection: a single (E, 2E) matmul instead of two (E, E) matmuls.
    kv = (jnp.dot(cc, wkv_ref[...], preferred_element_type=f32)
          + bkv_ref[...]).astype(cdt)                              # (B*Sk, 2E)
    k = kv[:, :E]
    v = kv[:, E:]

    if has_mask:
        mask = mask_ref[...].astype(f32)                           # (B, Sq, Sk) additive mask

    wo = wo_ref[...]                                               # (E, E) in compute dtype

    # Per-head attention, batched over B via dot_general batch dims.  The head concat is
    # fused into the output projection: dense = sum_h head_out_h @ wo[h*D:(h+1)*D, :].
    dense = None
    for h in range(num_heads):                                     # static, unrolled
        sl = slice(h * head_dim, (h + 1) * head_dim)
        qh = q[:, sl].reshape(B, Sq, head_dim)
        kh = k[:, sl].reshape(B, Sk, head_dim)
        vh = v[:, sl].reshape(B, Sk, head_dim)

        s = jnp.einsum('bqd,bkd->bqk', qh, kh,
                       preferred_element_type=f32)                 # (B, Sq, Sk) f32
        if has_mask:
            s = s + mask
        m = jnp.max(s, axis=-1, keepdims=True)
        p = jnp.exp(s - m)
        denom = jnp.sum(p, axis=-1, keepdims=True)
        p = p * pl.reciprocal(denom, approx=approx_recip)          # softmax over keys (f32)
        # TODO(synk): attention dropout (p=0.1) omitted -- inference semantics (identity).

        hout = jnp.einsum('bqk,bkd->bqd', p.astype(cdt), vh,
                          preferred_element_type=f32)              # (B, Sq, D) f32
        partial = jnp.dot(hout.reshape(B * Sq, head_dim).astype(cdt), wo[sl, :],
                          preferred_element_type=f32)              # (B*Sq, E) f32
        dense = partial if dense is None else dense + partial

    dense = dense + bo_ref[...]
    # TODO(synk): output dropout (p=0.1) omitted -- inference semantics (identity).

    # Residual add + LayerNorm(eps=1e-6); biased variance (as torch), stats in f32.
    res = dense + x
    mu = jnp.mean(res, axis=-1, keepdims=True)
    var = jnp.mean((res - mu) ** 2, axis=-1, keepdims=True)
    normed = (res - mu) * jax.lax.rsqrt(var + 1e-6)
    out_ref[...] = (normed * lnw_ref[...] + lnb_ref[...]).astype(out_ref.dtype)


def cross_att_forward(x, ctx, mask, params, num_heads, compute_dtype=jnp.bfloat16):
    """x: (B,Sq,E), ctx: (B,Sk,E), mask: (B,Sq,Sk) additive or None."""
    B, Sq, E = x.shape
    _, Sk, _ = ctx.shape
    head_dim = E // num_heads
    (wq, bq, wk, bk, wv, bv, wo, bo, lnw, lnb) = params

    cdt = jnp.dtype(compute_dtype)
    approx_recip = bool(cdt != jnp.dtype(jnp.float32))

    # Cast matmul weights in the wrapper (halves the weight HBM stream for bf16) and
    # pre-concatenate the K/V weights so the kernel does one fused projection matmul.
    wqc = wq.astype(cdt)
    woc = wo.astype(cdt)
    wkv = jnp.concatenate([wk, wv], axis=1).astype(cdt)     # (E, 2E)
    bkv = jnp.concatenate([bk, bv], axis=1)                 # (1, 2E) f32

    # Flatten batch*seq outside the kernel (free XLA reshape); kernel works on 2-D slabs.
    x2 = x.reshape(B * Sq, E)
    ctx2 = ctx.reshape(B * Sk, E)

    has_mask = mask is not None
    inputs = [x2, ctx2]
    if has_mask:
        inputs.append(mask)
    inputs += [wqc, bq, wkv, bkv, woc, bo, lnw, lnb]

    kernel = functools.partial(
        _cross_att_kernel, B=B, Sq=Sq, Sk=Sk, num_heads=num_heads,
        head_dim=head_dim, compute_dtype=cdt, has_mask=has_mask,
        approx_recip=approx_recip)

    out2 = pl.pallas_call(
        kernel,
        out_shape=jax.ShapeDtypeStruct((B * Sq, E), x.dtype),
        in_specs=[pl.BlockSpec(memory_space=pltpu.MemorySpace.VMEM) for _ in inputs],
        out_specs=pl.BlockSpec(memory_space=pltpu.MemorySpace.VMEM),
    )(*inputs)
    return out2.reshape(B, Sq, E)


def cross_att_reference(x, ctx, mask, params, num_heads):
    """Pure-JAX reference mirroring the PyTorch forward (dropout = identity)."""
    (wq, bq, wk, bk, wv, bv, wo, bo, lnw, lnb) = params
    B, Sq, E = x.shape
    _, Sk, _ = ctx.shape
    D = E // num_heads
    q = x @ wq + bq
    k = ctx @ wk + bk
    v = ctx @ wv + bv

    def split(t, S):
        return t.reshape(B, S, num_heads, D).transpose(0, 2, 1, 3)  # (B,H,S,D)

    qh, kh, vh = split(q, Sq), split(k, Sk), split(v, Sk)
    scores = jnp.einsum("bhqd,bhkd->bhqk", qh, kh) / math.sqrt(D)
    if mask is not None:
        scores = scores + mask[:, None, :, :]
    probs = jax.nn.softmax(scores, axis=-1)
    cl = jnp.einsum("bhqk,bhkd->bhqd", probs, vh)
    cl = cl.transpose(0, 2, 1, 3).reshape(B, Sq, E)
    dense = cl @ wo + bo
    res = dense + x
    mu = jnp.mean(res, axis=-1, keepdims=True)
    var = jnp.mean((res - mu) ** 2, axis=-1, keepdims=True)
    return (res - mu) / jnp.sqrt(var + 1e-6) * lnw + lnb


if __name__ == "__main__":
    # Small config consistent with the module: embedding_size=32, n_heads=4.
    B, Sq, Sk, E, H = 2, 8, 8, 32, 4

    key = jax.random.PRNGKey(0)
    keys = jax.random.split(key, 13)
    std = 0.05
    wq = std * jax.random.normal(keys[0], (E, E), jnp.float32)
    bq = std * jax.random.normal(keys[1], (1, E), jnp.float32)
    wk = std * jax.random.normal(keys[2], (E, E), jnp.float32)
    bk = std * jax.random.normal(keys[3], (1, E), jnp.float32)
    wv = std * jax.random.normal(keys[4], (E, E), jnp.float32)
    bv = std * jax.random.normal(keys[5], (1, E), jnp.float32)
    wo = std * jax.random.normal(keys[6], (E, E), jnp.float32)
    bo = std * jax.random.normal(keys[7], (1, E), jnp.float32)
    lnw = jnp.ones((1, E), jnp.float32) + 0.1 * jax.random.normal(keys[8], (1, E), jnp.float32)
    lnb = 0.1 * jax.random.normal(keys[9], (1, E), jnp.float32)
    params = (wq, bq, wk, bk, wv, bv, wo, bo, lnw, lnb)

    x = jax.random.normal(keys[10], (B, Sq, E), jnp.float32)      # input_tensor
    ctx = jax.random.normal(keys[11], (B, Sk, E), jnp.float32)    # ctx_tensor

    ref = cross_att_reference(x, ctx, None, params, H)

    # 1) mask=None, f32 compute path (exact-semantics check).
    out_f32 = jax.block_until_ready(
        cross_att_forward(x, ctx, None, params, H, compute_dtype=jnp.float32))
    assert out_f32.shape == (B, Sq, E)
    assert jnp.allclose(out_f32, ref, atol=1e-4, rtol=1e-4), "f32 path mismatch vs reference"

    # 2) mask=None, bf16 matmul path (perf config; f32 accumulation / softmax / LayerNorm).
    out_bf16 = jax.block_until_ready(
        cross_att_forward(x, ctx, None, params, H, compute_dtype=jnp.bfloat16))
    assert jnp.allclose(out_bf16, ref, atol=3e-2, rtol=3e-2), "bf16 path mismatch vs reference"

    # 3) additive-mask path (f32) to exercise the mask-specialized kernel variant.
    mask = 0.5 * jax.random.normal(keys[12], (B, Sq, Sk), jnp.float32)
    out_m = jax.block_until_ready(
        cross_att_forward(x, ctx, mask, params, H, compute_dtype=jnp.float32))
    ref_m = cross_att_reference(x, ctx, mask, params, H)
    assert jnp.allclose(out_m, ref_m, atol=1e-4, rtol=1e-4), "masked path mismatch vs reference"

    print("KERNEL_OK")
</pallas_src>

<mosaic_0001>
module attributes {stable_mosaic.version = 11 : i64} {
  func.func @_cross_att_kernel(%arg0: memref<16x32xf32, #tpu.memory_space<vmem>>, %arg1: memref<16x32xf32, #tpu.memory_space<vmem>>, %arg2: memref<32x32xf32, #tpu.memory_space<vmem>>, %arg3: memref<1x32xf32, #tpu.memory_space<vmem>>, %arg4: memref<32x64xf32, #tpu.memory_space<vmem>>, %arg5: memref<1x64xf32, #tpu.memory_space<vmem>>, %arg6: memref<32x32xf32, #tpu.memory_space<vmem>>, %arg7: memref<1x32xf32, #tpu.memory_space<vmem>>, %arg8: memref<1x32xf32, #tpu.memory_space<vmem>>, %arg9: memref<1x32xf32, #tpu.memory_space<vmem>>, %arg10: memref<16x32xf32, #tpu.memory_space<vmem>>) attributes {dimension_semantics = [], scalar_prefetch = 0 : i64, scratch_operands = 0 : i64, tpu.core_type = #tpu.core_type<tc>} {
    %c0 = arith.constant 0 : index
    %c0_0 = arith.constant 0 : index
    %0 = vector.load %arg0[%c0, %c0_0] : memref<16x32xf32, #tpu.memory_space<vmem>>, vector<16x32xf32>
    %c0_1 = arith.constant 0 : index
    %c0_2 = arith.constant 0 : index
    %1 = vector.load %arg1[%c0_1, %c0_2] : memref<16x32xf32, #tpu.memory_space<vmem>>, vector<16x32xf32>
    %c0_3 = arith.constant 0 : index
    %c0_4 = arith.constant 0 : index
    %2 = vector.load %arg2[%c0_3, %c0_4] : memref<32x32xf32, #tpu.memory_space<vmem>>, vector<32x32xf32>
    %cst = arith.constant dense<0.000000e+00> : vector<16x32xf32>
    %3 = tpu.matmul %0, %2, %cst {dimension_numbers = #tpu.dot_dimension_numbers<[1], [0], [0], [1], [0, 0, 1, 1], [], []>} : vector<16x32xf32>, vector<32x32xf32>, vector<16x32xf32> -> vector<16x32xf32>
    %c0_5 = arith.constant 0 : index
    %c0_6 = arith.constant 0 : index
    %4 = vector.load %arg3[%c0_5, %c0_6] : memref<1x32xf32, #tpu.memory_space<vmem>>, vector<1x32xf32>
    %5 = vector.broadcast %4 : vector<1x32xf32> to vector<16x32xf32>
    %6 = arith.addf %3, %5 : vector<16x32xf32>
    %cst_7 = arith.constant 0.353553385 : f32
    %7 = vector.broadcast %cst_7 : f32 to vector<16x32xf32>
    %8 = arith.mulf %6, %7 : vector<16x32xf32>
    %c0_8 = arith.constant 0 : index
    %c0_9 = arith.constant 0 : index
    %9 = vector.load %arg4[%c0_8, %c0_9] : memref<32x64xf32, #tpu.memory_space<vmem>>, vector<32x64xf32>
    %cst_10 = arith.constant dense<0.000000e+00> : vector<16x64xf32>
    %10 = tpu.matmul %1, %9, %cst_10 {dimension_numbers = #tpu.dot_dimension_numbers<[1], [0], [0], [1], [0, 0, 1, 1], [], []>} : vector<16x32xf32>, vector<32x64xf32>, vector<16x64xf32> -> vector<16x64xf32>
    %c0_11 = arith.constant 0 : index
    %c0_12 = arith.constant 0 : index
    %11 = vector.load %arg5[%c0_11, %c0_12] : memref<1x64xf32, #tpu.memory_space<vmem>>, vector<1x64xf32>
    %12 = vector.broadcast %11 : vector<1x64xf32> to vector<16x64xf32>
    %13 = arith.addf %10, %12 : vector<16x64xf32>
    %14 = vector.extract_strided_slice %13 {offsets = [0, 0], sizes = [16, 32], strides = [1, 1]} : vector<16x64xf32> to vector<16x32xf32>
    %15 = vector.extract_strided_slice %13 {offsets = [0, 32], sizes = [16, 32], strides = [1, 1]} : vector<16x64xf32> to vector<16x32xf32>
    %c0_13 = arith.constant 0 : index
    %c0_14 = arith.constant 0 : index
    %16 = vector.load %arg6[%c0_13, %c0_14] : memref<32x32xf32, #tpu.memory_space<vmem>>, vector<32x32xf32>
    %17 = vector.extract_strided_slice %8 {offsets = [0, 0], sizes = [16, 8], strides = [1, 1]} : vector<16x32xf32> to vector<16x8xf32>
    %18 = vector.shape_cast %17 : vector<16x8xf32> to vector<2x8x8xf32>
    %19 = vector.extract_strided_slice %14 {offsets = [0, 0], sizes = [16, 8], strides = [1, 1]} : vector<16x32xf32> to vector<16x8xf32>
    %20 = vector.shape_cast %19 : vector<16x8xf32> to vector<2x8x8xf32>
    %21 = vector.extract_strided_slice %15 {offsets = [0, 0], sizes = [16, 8], strides = [1, 1]} : vector<16x32xf32> to vector<16x8xf32>
    %22 = vector.shape_cast %21 : vector<16x8xf32> to vector<2x8x8xf32>
    "tpu.trace_start"() <{level = 10 : i32, message = "bqd,bkd->bqk"}> : () -> ()
    %cst_15 = arith.constant dense<0.000000e+00> : vector<2x8x8xf32>
    %23 = tpu.matmul %18, %20, %cst_15 {dimension_numbers = #tpu.dot_dimension_numbers<[2], [2], [1], [1], [0, 0, 0, 1, 1, 1], [0], [0]>} : vector<2x8x8xf32>, vector<2x8x8xf32>, vector<2x8x8xf32> -> vector<2x8x8xf32>
    "tpu.trace_stop"() : () -> ()
    %cst_16 = arith.constant dense<0xFF800000> : vector<2x8xf32>
    %24 = vector.multi_reduction <maximumf>, %23, %cst_16 [2] : vector<2x8x8xf32> to vector<2x8xf32>
    %25 = vector.shape_cast %24 : vector<2x8xf32> to vector<2x8x1xf32>
    %26 = vector.broadcast %25 : vector<2x8x1xf32> to vector<2x8x8xf32>
    %27 = arith.subf %23, %26 : vector<2x8x8xf32>
    %28 = math.exp %27 : vector<2x8x8xf32>
    %cst_17 = arith.constant dense<0.000000e+00> : vector<2x8xf32>
    %29 = vector.multi_reduction <add>, %28, %cst_17 [2] : vector<2x8x8xf32> to vector<2x8xf32>
    %30 = vector.shape_cast %29 : vector<2x8xf32> to vector<2x8x1xf32>
    %31 = tpu.reciprocal %30 : vector<2x8x1xf32> -> vector<2x8x1xf32>
    %32 = vector.broadcast %31 : vector<2x8x1xf32> to vector<2x8x8xf32>
    %33 = arith.mulf %28, %32 : vector<2x8x8xf32>
    "tpu.trace_start"() <{level = 10 : i32, message = "bqk,bkd->bqd"}> : () -> ()
    %cst_18 = arith.constant dense<0.000000e+00> : vector<2x8x8xf32>
    %34 = tpu.matmul %33, %22, %cst_18 {dimension_numbers = #tpu.dot_dimension_numbers<[2], [1], [1], [2], [0, 0, 0, 1, 1, 2], [0], [0]>} : vector<2x8x8xf32>, vector<2x8x8xf32>, vector<2x8x8xf32> -> vector<2x8x8xf32>
    "tpu.trace_stop"() : () -> ()
    %35 = vector.shape_cast %34 : vector<2x8x8xf32> to vector<16x8xf32>
    %36 = vector.extract_strided_slice %16 {offsets = [0, 0], sizes = [8, 32], strides = [1, 1]} : vector<32x32xf32> to vector<8x32xf32>
    %cst_19 = arith.constant dense<0.000000e+00> : vector<16x32xf32>
    %37 = tpu.matmul %35, %36, %cst_19 {dimension_numbers = #tpu.dot_dimension_numbers<[1], [0], [0], [1], [0, 0, 1, 1], [], []>} : vector<16x8xf32>, vector<8x32xf32>, vector<16x32xf32> -> vector<16x32xf32>
    %38 = vector.extract_strided_slice %8 {offsets = [0, 8], sizes = [16, 8], strides = [1, 1]} : vector<16x32xf32> to vector<16x8xf32>
    %39 = vector.shape_cast %38 : vector<16x8xf32> to vector<2x8x8xf32>
    %40 = vector.extract_strided_slice %14 {offsets = [0, 8], sizes = [16, 8], strides = [1, 1]} : vector<16x32xf32> to vector<16x8xf32>
    %41 = vector.shape_cast %40 : vector<16x8xf32> to vector<2x8x8xf32>
    %42 = vector.extract_strided_slice %15 {offsets = [0, 8], sizes = [16, 8], strides = [1, 1]} : vector<16x32xf32> to vector<16x8xf32>
    %43 = vector.shape_cast %42 : vector<16x8xf32> to vector<2x8x8xf32>
    "tpu.trace_start"() <{level = 10 : i32, message = "bqd,bkd->bqk"}> : () -> ()
    %cst_20 = arith.constant dense<0.000000e+00> : vector<2x8x8xf32>
    %44 = tpu.matmul %39, %41, %cst_20 {dimension_numbers = #tpu.dot_dimension_numbers<[2], [2], [1], [1], [0, 0, 0, 1, 1, 1], [0], [0]>} : vector<2x8x8xf32>, vector<2x8x8xf32>, vector<2x8x8xf32> -> vector<2x8x8xf32>
    "tpu.trace_stop"() : () -> ()
    %cst_21 = arith.constant dense<0xFF800000> : vector<2x8xf32>
    %45 = vector.multi_reduction <maximumf>, %44, %cst_21 [2] : vector<2x8x8xf32> to vector<2x8xf32>
    %46 = vector.shape_cast %45 : vector<2x8xf32> to vector<2x8x1xf32>
    %47 = vector.broadcast %46 : vector<2x8x1xf32> to vector<2x8x8xf32>
    %48 = arith.subf %44, %47 : vector<2x8x8xf32>
    %49 = math.exp %48 : vector<2x8x8xf32>
    %cst_22 = arith.constant dense<0.000000e+00> : vector<2x8xf32>
    %50 = vector.multi_reduction <add>, %49, %cst_22 [2] : vector<2x8x8xf32> to vector<2x8xf32>
    %51 = vector.shape_cast %50 : vector<2x8xf32> to vector<2x8x1xf32>
    %52 = tpu.reciprocal %51 : vector<2x8x1xf32> -> vector<2x8x1xf32>
    %53 = vector.broadcast %52 : vector<2x8x1xf32> to vector<2x8x8xf32>
    %54 = arith.mulf %49, %53 : vector<2x8x8xf32>
    "tpu.trace_start"() <{level = 10 : i32, message = "bqk,bkd->bqd"}> : () -> ()
    %cst_23 = arith.constant dense<0.000000e+00> : vector<2x8x8xf32>
    %55 = tpu.matmul %54, %43, %cst_23 {dimension_numbers = #tpu.dot_dimension_numbers<[2], [1], [1], [2], [0, 0, 0, 1, 1, 2], [0], [0]>} : vector<2x8x8xf32>, vector<2x8x8xf32>, vector<2x8x8xf32> -> vector<2x8x8xf32>
    "tpu.trace_stop"() : () -> ()
    %56 = vector.shape_cast %55 : vector<2x8x8xf32> to vector<16x8xf32>
    %57 = vector.extract_strided_slice %16 {offsets = [8, 0], sizes = [8, 32], strides = [1, 1]} : vector<32x32xf32> to vector<8x32xf32>
    %cst_24 = arith.constant dense<0.000000e+00> : vector<16x32xf32>
    %58 = tpu.matmul %56, %57, %cst_24 {dimension_numbers = #tpu.dot_dimension_numbers<[1], [0], [0], [1], [0, 0, 1, 1], [], []>} : vector<16x8xf32>, vector<8x32xf32>, vector<16x32xf32> -> vector<16x32xf32>
    %59 = arith.addf %37, %58 : vector<16x32xf32>
    %60 = vector.extract_strided_slice %8 {offsets = [0, 16], sizes = [16, 8], strides = [1, 1]} : vector<16x32xf32> to vector<16x8xf32>
    %61 = vector.shape_cast %60 : vector<16x8xf32> to vector<2x8x8xf32>
    %62 = vector.extract_strided_slice %14 {offsets = [0, 16], sizes = [16, 8], strides = [1, 1]} : vector<16x32xf32> to vector<16x8xf32>
    %63 = vector.shape_cast %62 : vector<16x8xf32> to vector<2x8x8xf32>
    %64 = vector.extract_strided_slice %15 {offsets = [0, 16], sizes = [16, 8], strides = [1, 1]} : vector<16x32xf32> to vector<16x8xf32>
    %65 = vector.shape_cast %64 : vector<16x8xf32> to vector<2x8x8xf32>
    "tpu.trace_start"() <{level = 10 : i32, message = "bqd,bkd->bqk"}> : () -> ()
    %cst_25 = arith.constant dense<0.000000e+00> : vector<2x8x8xf32>
    %66 = tpu.matmul %61, %63, %cst_25 {dimension_numbers = #tpu.dot_dimension_numbers<[2], [2], [1], [1], [0, 0, 0, 1, 1, 1], [0], [0]>} : vector<2x8x8xf32>, vector<2x8x8xf32>, vector<2x8x8xf32> -> vector<2x8x8xf32>
    "tpu.trace_stop"() : () -> ()
    %cst_26 = arith.constant dense<0xFF800000> : vector<2x8xf32>
    %67 = vector.multi_reduction <maximumf>, %66, %cst_26 [2] : vector<2x8x8xf32> to vector<2x8xf32>
    %68 = vector.shape_cast %67 : vector<2x8xf32> to vector<2x8x1xf32>
    %69 = vector.broadcast %68 : vector<2x8x1xf32> to vector<2x8x8xf32>
    %70 = arith.subf %66, %69 : vector<2x8x8xf32>
    %71 = math.exp %70 : vector<2x8x8xf32>
    %cst_27 = arith.constant dense<0.000000e+00> : vector<2x8xf32>
    %72 = vector.multi_reduction <add>, %71, %cst_27 [2] : vector<2x8x8xf32> to vector<2x8xf32>
    %73 = vector.shape_cast %72 : vector<2x8xf32> to vector<2x8x1xf32>
    %74 = tpu.reciprocal %73 : vector<2x8x1xf32> -> vector<2x8x1xf32>
    %75 = vector.broadcast %74 : vector<2x8x1xf32> to vector<2x8x8xf32>
    %76 = arith.mulf %71, %75 : vector<2x8x8xf32>
    "tpu.trace_start"() <{level = 10 : i32, message = "bqk,bkd->bqd"}> : () -> ()
    %cst_28 = arith.constant dense<0.000000e+00> : vector<2x8x8xf32>
    %77 = tpu.matmul %76, %65, %cst_28 {dimension_numbers = #tpu.dot_dimension_numbers<[2], [1], [1], [2], [0, 0, 0, 1, 1, 2], [0], [0]>} : vector<2x8x8xf32>, vector<2x8x8xf32>, vector<2x8x8xf32> -> vector<2x8x8xf32>
    "tpu.trace_stop"() : () -> ()
    %78 = vector.shape_cast %77 : vector<2x8x8xf32> to vector<16x8xf32>
    %79 = vector.extract_strided_slice %16 {offsets = [16, 0], sizes = [8, 32], strides = [1, 1]} : vector<32x32xf32> to vector<8x32xf32>
    %cst_29 = arith.constant dense<0.000000e+00> : vector<16x32xf32>
    %80 = tpu.matmul %78, %79, %cst_29 {dimension_numbers = #tpu.dot_dimension_numbers<[1], [0], [0], [1], [0, 0, 1, 1], [], []>} : vector<16x8xf32>, vector<8x32xf32>, vector<16x32xf32> -> vector<16x32xf32>
    %81 = arith.addf %59, %80 : vector<16x32xf32>
    %82 = vector.extract_strided_slice %8 {offsets = [0, 24], sizes = [16, 8], strides = [1, 1]} : vector<16x32xf32> to vector<16x8xf32>
    %83 = vector.shape_cast %82 : vector<16x8xf32> to vector<2x8x8xf32>
    %84 = vector.extract_strided_slice %14 {offsets = [0, 24], sizes = [16, 8], strides = [1, 1]} : vector<16x32xf32> to vector<16x8xf32>
    %85 = vector.shape_cast %84 : vector<16x8xf32> to vector<2x8x8xf32>
    %86 = vector.extract_strided_slice %15 {offsets = [0, 24], sizes = [16, 8], strides = [1, 1]} : vector<16x32xf32> to vector<16x8xf32>
    %87 = vector.shape_cast %86 : vector<16x8xf32> to vector<2x8x8xf32>
    "tpu.trace_start"() <{level = 10 : i32, message = "bqd,bkd->bqk"}> : () -> ()
    %cst_30 = arith.constant dense<0.000000e+00> : vector<2x8x8xf32>
    %88 = tpu.matmul %83, %85, %cst_30 {dimension_numbers = #tpu.dot_dimension_numbers<[2], [2], [1], [1], [0, 0, 0, 1, 1, 1], [0], [0]>} : vector<2x8x8xf32>, vector<2x8x8xf32>, vector<2x8x8xf32> -> vector<2x8x8xf32>
    "tpu.trace_stop"() : () -> ()
    %cst_31 = arith.constant dense<0xFF800000> : vector<2x8xf32>
    %89 = vector.multi_reduction <maximumf>, %88, %cst_31 [2] : vector<2x8x8xf32> to vector<2x8xf32>
    %90 = vector.shape_cast %89 : vector<2x8xf32> to vector<2x8x1xf32>
    %91 = vector.broadcast %90 : vector<2x8x1xf32> to vector<2x8x8xf32>
    %92 = arith.subf %88, %91 : vector<2x8x8xf32>
    %93 = math.exp %92 : vector<2x8x8xf32>
    %cst_32 = arith.constant dense<0.000000e+00> : vector<2x8xf32>
    %94 = vector.multi_reduction <add>, %93, %cst_32 [2] : vector<2x8x8xf32> to vector<2x8xf32>
    %95 = vector.shape_cast %94 : vector<2x8xf32> to vector<2x8x1xf32>
    %96 = tpu.reciprocal %95 : vector<2x8x1xf32> -> vector<2x8x1xf32>
    %97 = vector.broadcast %96 : vector<2x8x1xf32> to vector<2x8x8xf32>
    %98 = arith.mulf %93, %97 : vector<2x8x8xf32>
    "tpu.trace_start"() <{level = 10 : i32, message = "bqk,bkd->bqd"}> : () -> ()
    %cst_33 = arith.constant dense<0.000000e+00> : vector<2x8x8xf32>
    %99 = tpu.matmul %98, %87, %cst_33 {dimension_numbers = #tpu.dot_dimension_numbers<[2], [1], [1], [2], [0, 0, 0, 1, 1, 2], [0], [0]>} : vector<2x8x8xf32>, vector<2x8x8xf32>, vector<2x8x8xf32> -> vector<2x8x8xf32>
    "tpu.trace_stop"() : () -> ()
    %100 = vector.shape_cast %99 : vector<2x8x8xf32> to vector<16x8xf32>
    %101 = vector.extract_strided_slice %16 {offsets = [24, 0], sizes = [8, 32], strides = [1, 1]} : vector<32x32xf32> to vector<8x32xf32>
    %cst_34 = arith.constant dense<0.000000e+00> : vector<16x32xf32>
    %102 = tpu.matmul %100, %101, %cst_34 {dimension_numbers = #tpu.dot_dimension_numbers<[1], [0], [0], [1], [0, 0, 1, 1], [], []>} : vector<16x8xf32>, vector<8x32xf32>, vector<16x32xf32> -> vector<16x32xf32>
    %103 = arith.addf %81, %102 : vector<16x32xf32>
    %c0_35 = arith.constant 0 : index
    %c0_36 = arith.constant 0 : index
    %104 = vector.load %arg7[%c0_35, %c0_36] : memref<1x32xf32, #tpu.memory_space<vmem>>, vector<1x32xf32>
    %105 = vector.broadcast %104 : vector<1x32xf32> to vector<16x32xf32>
    %106 = arith.addf %103, %105 : vector<16x32xf32>
    %107 = arith.addf %106, %0 : vector<16x32xf32>
    %cst_37 = arith.constant dense<0.000000e+00> : vector<16xf32>
    %108 = vector.multi_reduction <add>, %107, %cst_37 [1] : vector<16x32xf32> to vector<16xf32>
    %109 = vector.shape_cast %108 : vector<16xf32> to vector<16x1xf32>
    %cst_38 = arith.constant 3.200000e+01 : f32
    %110 = vector.broadcast %cst_38 : f32 to vector<16x1xf32>
    %111 = arith.divf %109, %110 : vector<16x1xf32>
    %112 = vector.broadcast %111 : vector<16x1xf32> to vector<16x32xf32>
    %113 = arith.subf %107, %112 : vector<16x32xf32>
    %114 = arith.mulf %113, %113 : vector<16x32xf32>
    %cst_39 = arith.constant dense<0.000000e+00> : vector<16xf32>
    %115 = vector.multi_reduction <add>, %114, %cst_39 [1] : vector<16x32xf32> to vector<16xf32>
    %116 = vector.shape_cast %115 : vector<16xf32> to vector<16x1xf32>
    %cst_40 = arith.constant 3.200000e+01 : f32
    %117 = vector.broadcast %cst_40 : f32 to vector<16x1xf32>
    %118 = arith.divf %116, %117 : vector<16x1xf32>
    %119 = vector.broadcast %111 : vector<16x1xf32> to vector<16x32xf32>
    %120 = arith.subf %107, %119 : vector<16x32xf32>
    %cst_41 = arith.constant 9.99999997E-7 : f32
    %121 = vector.broadcast %cst_41 : f32 to vector<16x1xf32>
    %122 = arith.addf %118, %121 : vector<16x1xf32>
    %123 = math.rsqrt %122 : vector<16x1xf32>
    %124 = vector.broadcast %123 : vector<16x1xf32> to vector<16x32xf32>
    %125 = arith.mulf %120, %124 : vector<16x32xf32>
    %c0_42 = arith.constant 0 : index
    %c0_43 = arith.constant 0 : index
    %126 = vector.load %arg8[%c0_42, %c0_43] : memref<1x32xf32, #tpu.memory_space<vmem>>, vector<1x32xf32>
    %127 = vector.broadcast %126 : vector<1x32xf32> to vector<16x32xf32>
    %128 = arith.mulf %125, %127 : vector<16x32xf32>
    %c0_44 = arith.constant 0 : index
    %c0_45 = arith.constant 0 : index
    %129 = vector.load %arg9[%c0_44, %c0_45] : memref<1x32xf32, #tpu.memory_space<vmem>>, vector<1x32xf32>
    %130 = vector.broadcast %129 : vector<1x32xf32> to vector<16x32xf32>
    %131 = arith.addf %128, %130 : vector<16x32xf32>
    %c0_46 = arith.constant 0 : index
    %c0_47 = arith.constant 0 : index
    %132 = vector.load %arg10[%c0_46, %c0_47] : memref<16x32xf32, #tpu.memory_space<vmem>>, vector<16x32xf32>
    tpu.vector_store %arg10[%c0_46, %c0_47], %131 {strides = array<i32>} : memref<16x32xf32, #tpu.memory_space<vmem>>, vector<16x32xf32>,
    return
  }
}

</mosaic_0001>

<llo_original>
// kernel: tpu_custom_call.1
$region0: #{tpu_custom_call.1}
  #allocation0 [shape = 'u32[]', space=smem, size = 0x4, offset = 0x4, fixed_abs, tag = 'smem constant byte address 0x4 - core index']
  #allocation1 [shape = 'u32[144,128]{1,0:T(1,128)}', space=vmem, size = 0x12000, scoped, tag = 'internal scratch']
  %s0 = inlined_call_operand.hbm [shape: f32[16,32], index: 0, kind: input, shape index: {}]
  %s1 = inlined_call_operand.hbm [shape: f32[16,32], index: 1, kind: input, shape index: {}]
  %s2 = inlined_call_operand.hbm [shape: f32[32,32], index: 2, kind: input, shape index: {}]
  %s3 = inlined_call_operand.vmem [shape: f32[1,32], index: 3, kind: input, shape index: {}]
  %s4 = inlined_call_operand.hbm [shape: f32[32,64], index: 4, kind: input, shape index: {}]
  %s5 = inlined_call_operand.vmem [shape: f32[1,64], index: 5, kind: input, shape index: {}]
  %s6 = inlined_call_operand.hbm [shape: f32[32,32], index: 6, kind: input, shape index: {}]
  %s7 = inlined_call_operand.vmem [shape: f32[1,32], index: 7, kind: input, shape index: {}]
  %s8 = inlined_call_operand.vmem [shape: f32[1,32], index: 8, kind: input, shape index: {}]
  %s9 = inlined_call_operand.vmem [shape: f32[1,32], index: 9, kind: input, shape index: {}]
  %s10 = inlined_call_operand.hbm [shape: f32[16,32], index: 10, kind: output, shape index: {}]
  %s11 = sld [smem:[#allocation0]]
  $region70: #{tpu_custom_call.1} parent=0
    _
  %s13 = ssub.s32 1, %s11
  %s14 = scalar_select 0, %s13, %s11
  $region1: #{tpu_custom_call.1} parent=0
    #allocation2 [shape = 'u8[8192]{0}', space=vmem, size = 0x2000, scoped, tag = 'input window, operand 0, single buffered']
    #allocation3 [shape = 's32[1]{0}', space=sflag, size = 0x4, scoped, tag = 'scoped memory for tpu_custom_call.1']
    #allocation4 [shape = 's32[1]{0}', space=sflag, size = 0x4, scoped, tag = 'scoped memory for tpu_custom_call.1']
    #allocation5 [shape = 'u8[8192]{0}', space=vmem, size = 0x2000, scoped, tag = 'input window, operand 1, single buffered']
    #allocation6 [shape = 's32[1]{0}', space=sflag, size = 0x4, scoped, tag = 'scoped memory for tpu_custom_call.1']
    #allocation7 [shape = 'u8[16384]{0}', space=vmem, size = 0x4000, scoped, tag = 'input window, operand 2, single buffered']
    #allocation8 [shape = 'u8[16384]{0}', space=vmem, size = 0x4000, scoped, tag = 'input window, operand 4, single buffered']
    #allocation9 [shape = 's32[1]{0}', space=sflag, size = 0x4, scoped, tag = 'scoped memory for tpu_custom_call.1']
    #allocation10 [shape = 'u8[16384]{0}', space=vmem, size = 0x4000, scoped, tag = 'input window, operand 6, single buffered']
    #allocation11 [shape = 'u8[8192]{0}', space=vmem, size = 0x2000, scoped, tag = 'output window, operand 0, single buffered']
    %15 = vsyncpa [#allocation3], 0
    %16 = vsyncpa [#allocation6], 0
    %17 = vsyncpa [#allocation9], 0
    %18 = vsyncpa [#allocation4], 0
    // Predicated region
    $region2: #{tpu_custom_call.1} parent=1 // pred_check
      _
    $region3: #{tpu_custom_call.1} parent=1 // pred_check_branch
      %20 = sbr.rel (0) target = $region5
    $region4: #{tpu_custom_call.1} parent=1 // pred_region
      %s22 = ssub.s32 256, 256
      %23 = vsyncadd [#allocation3], %s22
      %s24 = sshll.u32 [#allocation2], 4
      %s25 = int_to_ptr.vmem [resolvable:$true] %s24
      %30 = dma.hbm_to_vmem [thread:$0]  %s0, 256, %s25, [#allocation3], 128, 128, 8
    $region5: #{tpu_custom_call.1} parent=1 // pred_fallthru
      _
    // Predicated region
    $region6: #{tpu_custom_call.1} parent=1 // pred_check
      _
    $region7: #{tpu_custom_call.1} parent=1 // pred_check_branch
      %32 = sbr.rel (0) target = $region9
    $region8: #{tpu_custom_call.1} parent=1 // pred_region
      %s34 = ssub.s32 256, 256
      %35 = vsyncadd [#allocation6], %s34
      %s36 = sshll.u32 [#allocation5], 4
      %s37 = int_to_ptr.vmem [resolvable:$true] %s36
      %42 = dma.hbm_to_vmem [thread:$0]  %s1, 256, %s37, [#allocation6], 128, 128, 8
    $region9: #{tpu_custom_call.1} parent=1 // pred_fallthru
      _
    // Predicated region
    $region10: #{tpu_custom_call.1} parent=1 // pred_check
      _
    $region11: #{tpu_custom_call.1} parent=1 // pred_check_branch
      %44 = sbr.rel (0) target = $region13
    $region12: #{tpu_custom_call.1} parent=1 // pred_region
      %s46 = ssub.s32 512, 512
      %47 = vsyncadd [#allocation6], %s46
      %s48 = sshll.u32 [#allocation7], 4
      %s49 = int_to_ptr.vmem [resolvable:$true] %s48
      %54 = dma.hbm_to_vmem [thread:$0]  %s2, 512, %s49, [#allocation6], 128, 128, 8
    $region13: #{tpu_custom_call.1} parent=1 // pred_fallthru
      _
    // Predicated region
    $region14: #{tpu_custom_call.1} parent=1 // pred_check
      _
    $region15: #{tpu_custom_call.1} parent=1 // pred_check_branch
      %56 = sbr.rel (0) target = $region17
    $region16: #{tpu_custom_call.1} parent=1 // pred_region
      _
    $region17: #{tpu_custom_call.1} parent=1 // pred_fallthru
      _
    // Predicated region
    $region18: #{tpu_custom_call.1} parent=1 // pred_check
      _
    $region19: #{tpu_custom_call.1} parent=1 // pred_check_branch
      %58 = sbr.rel (0) target = $region21
    $region20: #{tpu_custom_call.1} parent=1 // pred_region
      %s60 = ssub.s32 512, 512
      %61 = vsyncadd [#allocation9], %s60
      %s62 = sshll.u32 [#allocation8], 4
      %s63 = int_to_ptr.vmem [resolvable:$true] %s62
      %68 = dma.hbm_to_vmem [thread:$0]  %s4, 512, %s63, [#allocation9], 128, 128, 8
    $region21: #{tpu_custom_call.1} parent=1 // pred_fallthru
      _
    // Predicated region
    $region22: #{tpu_custom_call.1} parent=1 // pred_check
      _
    $region23: #{tpu_custom_call.1} parent=1 // pred_check_branch
      %70 = sbr.rel (0) target = $region25
    $region24: #{tpu_custom_call.1} parent=1 // pred_region
      _
    $region25: #{tpu_custom_call.1} parent=1 // pred_fallthru
      _
    // Predicated region
    $region26: #{tpu_custom_call.1} parent=1 // pred_check
      _
    $region27: #{tpu_custom_call.1} parent=1 // pred_check_branch
      %72 = sbr.rel (0) target = $region29
    $region28: #{tpu_custom_call.1} parent=1 // pred_region
      %s74 = ssub.s32 512, 512
      %75 = vsyncadd [#allocation9], %s74
      %s76 = sshll.u32 [#allocation10], 4
      %s77 = int_to_ptr.vmem [resolvable:$true] %s76
      %82 = dma.hbm_to_vmem [thread:$0]  %s6, 512, %s77, [#allocation9], 128, 128, 8
    $region29: #{tpu_custom_call.1} parent=1 // pred_fallthru
      _
    // Predicated region
    $region30: #{tpu_custom_call.1} parent=1 // pred_check
      _
    $region31: #{tpu_custom_call.1} parent=1 // pred_check_branch
      %84 = sbr.rel (0) target = $region33
    $region32: #{tpu_custom_call.1} parent=1 // pred_region
      _
    $region33: #{tpu_custom_call.1} parent=1 // pred_fallthru
      _
    // Predicated region
    $region34: #{tpu_custom_call.1} parent=1 // pred_check
      _
    $region35: #{tpu_custom_call.1} parent=1 // pred_check_branch
      %86 = sbr.rel (0) target = $region37
    $region36: #{tpu_custom_call.1} parent=1 // pred_region
      _
    $region37: #{tpu_custom_call.1} parent=1 // pred_fallthru
      _
    // Predicated region
    $region38: #{tpu_custom_call.1} parent=1 // pred_check
      _
    $region39: #{tpu_custom_call.1} parent=1 // pred_check_branch
      %88 = sbr.rel (0) target = $region41
    $region40: #{tpu_custom_call.1} parent=1 // pred_region
      _
    $region41: #{tpu_custom_call.1} parent=1 // pred_fallthru
      _
    // Predicated region
    $region42: #{tpu_custom_call.1} parent=1 // pred_check
      _
    $region43: #{tpu_custom_call.1} parent=1 // pred_check_branch
      %90 = sbr.rel (0) target = $region45
    $region44: #{tpu_custom_call.1} parent=1 // pred_region
      %91 = dma.done [#allocation3], 256
    $region45: #{tpu_custom_call.1} parent=1 // pred_fallthru
      _
    // Predicated region
    $region46: #{tpu_custom_call.1} parent=1 // pred_check
      _
    $region47: #{tpu_custom_call.1} parent=1 // pred_check_branch
      %93 = sbr.rel (0) target = $region49
    $region48: #{tpu_custom_call.1} parent=1 // pred_region
      %94 = dma.done [#allocation6], 256
    $region49: #{tpu_custom_call.1} parent=1 // pred_fallthru
      _
    // Predicated region
    $region50: #{tpu_custom_call.1} parent=1 // pred_check
      _
    $region51: #{tpu_custom_call.1} parent=1 // pred_check_branch
      %96 = sbr.rel (0) target = $region53
    $region52: #{tpu_custom_call.1} parent=1 // pred_region
      %97 = dma.done [#allocation6], 512
    $region53: #{tpu_custom_call.1} parent=1 // pred_fallthru
      _
    // Predicated region
    $region54: #{tpu_custom_call.1} parent=1 // pred_check
      _
    $region55: #{tpu_custom_call.1} parent=1 // pred_check_branch
      %99 = sbr.rel (0) target = $region57
    $region56: #{tpu_custom_call.1} parent=1 // pred_region
      %100 = dma.done [#allocation9], 512
    $region57: #{tpu_custom_call.1} parent=1 // pred_fallthru
      _
    // Predicated region
    $region58: #{tpu_custom_call.1} parent=1 // pred_check
      _
    $region59: #{tpu_custom_call.1} parent=1 // pred_check_branch
      %102 = sbr.rel (0) target = $region61
    $region60: #{tpu_custom_call.1} parent=1 // pred_region
      %103 = dma.done [#allocation9], 512
    $region61: #{tpu_custom_call.1} parent=1 // pred_fallthru
      _
    %v104 = vld [vmem:[#allocation2] sm:$0xff]
    %v105 = vld [vmem:[#allocation2 + $0x8] sm:$0xff]
    %v106 = vld [vmem:[#allocation5] sm:$0xff]
    %v107 = vld [vmem:[#allocation5 + $0x8] sm:$0xff]
    %v108 = vld [vmem:[#allocation7] sm:$0xff]
    %v109 = vld [vmem:[#allocation7 + $0x8] sm:$0xff]
    %v110 = vld [vmem:[#allocation7 + $0x10] sm:$0xff]
    %v111 = vld [vmem:[#allocation7 + $0x18] sm:$0xff]
    %v112 = vld [vmem:[%s3] sm:$0x1]
    %v114 = vlaneseq
    %v115 = vshrl.u32 %v114, 7
    %v116 = vsub.s32 0, %v115
    %v117 = vrot.slane %v112, %v116
    %vm119 = vcmask 261120
    %v121 = vsel %vm119, %v104, 0
    %v124 = vsel %vm119, %v105, 0
    %126 = vmatprep.subr.mxu0 0.0
    %127 = vmatpush1.msra.mxu0 0.0
    %128 = vmatprep.subr.mxu0 0.0
    %129 = vmatpush1.msra.mxu0 0.0
    %130 = vmatprep.subr.mxu0 0.0
    %131 = vmatpush1.msra.mxu0 0.0
    %132 = vmatprep.subr.mxu0 0.0
    %133 = vmatpush1.msra.mxu0 0.0
    %134 = vmatprep.subr.mxu0 0.0
    %135 = vmatpush1.msra.mxu0 0.0
    %136 = vmatprep.subr.mxu0 0.0
    %137 = vmatpush1.msra.mxu0 0.0
    %138 = vmatprep.subr.mxu0 0.0
    %139 = vmatpush1.msra.mxu0 0.0
    %140 = vmatprep.subr.mxu0 0.0
    %141 = vmatpush1.msra.mxu0 0.0
    %142 = vmatprep.subr.mxu0 0.0
    %143 = vmatpush1.msra.mxu0 0.0
    %144 = vmatprep.subr.mxu0 0.0
    %145 = vmatpush1.msra.mxu0 0.0
    %146 = vmatprep.subr.mxu0 0.0
    %147 = vmatpush1.msra.mxu0 0.0
    %148 = vmatprep.subr.mxu0 0.0
    %149 = vmatpush1.msra.mxu0 0.0
    %150 = vmatprep.subr.mxu0 0.0
    %151 = vmatpush1.msra.mxu0 %v111
    %152 = vmatprep.subr.mxu0 0.0
    %153 = vmatpush1.msra.mxu0 %v110
    %154 = vmatprep.subr.mxu0 0.0
    %155 = vmatpush1.msra.mxu0 %v109
    %156 = vmatprep.subr.mxu0 0.0
    %157 = vmatpush1.msra.mxu0 %v108
    %158 = vmatprep.subr.mxu0 0.0
    %159 = vmatpush2.msra.mxu0 0.0
    %160 = vmatprep.subr.mxu0 0.0
    %161 = vmatpush2.msra.mxu0 0.0
    %162 = vmatprep.subr.mxu0 0.0
    %163 = vmatpush2.msra.mxu0 0.0
    %164 = vmatprep.subr.mxu0 0.0
    %165 = vmatpush2.msra.mxu0 0.0
    %166 = vmatprep.subr.mxu0 0.0
    %167 = vmatpush2.msra.mxu0 0.0
    %168 = vmatprep.subr.mxu0 0.0
    %169 = vmatpush2.msra.mxu0 0.0
    %170 = vmatprep.subr.mxu0 0.0
    %171 = vmatpush2.msra.mxu0 0.0
    %172 = vmatprep.subr.mxu0 0.0
    %173 = vmatpush2.msra.mxu0 0.0
    %174 = vmatprep.subr.mxu0 0.0
    %175 = vmatpush2.msra.mxu0 0.0
    %176 = vmatprep.subr.mxu0 0.0
    %177 = vmatpush2.msra.mxu0 0.0
    %178 = vmatprep.subr.mxu0 0.0
    %179 = vmatpush2.msra.mxu0 0.0
    %180 = vmatprep.subr.mxu0 0.0
    %181 = vmatpush2.msra.mxu0 0.0
    %182 = vmatprep.subr.mxu0 0.0
    %183 = vmatpush2.msra.mxu0 0.0
    %184 = vmatprep.subr.mxu0 0.0
    %185 = vmatpush2.msra.mxu0 0.0
    %186 = vmatprep.subr.mxu0 0.0
    %187 = vmatpush2.msra.mxu0 0.0
    %188 = vmatprep.subr.mxu0 0.0
    %189 = vmatpush2.msra.mxu0 0.0
    %190 = vmatprep.mubr.f32.mxu0 0.0
    %191 = vmatmul.mubr.f32.gmra.mxu0 %v121
    %v192 = vpop.f32.mrf.mxu0
    %v193 = vadd.f32 %v117, %v192
    %v194 = vpop.f32.mrf.mxu0
    %195 = vmatprep.mubr.f32.mxu0 0.0
    %196 = vmatmul.mubr.f32.gmra.mxu0 %v124
    %v197 = vpop.f32.mrf.mxu0
    %v198 = vadd.f32 %v117, %v197
    %v199 = vpop.f32.mrf.mxu0
    %200 = vdwg.mxu0
    %v201 = vmul.f32 %v193, 0.35355338
    %v202 = vmul.f32 %v198, 0.35355338
    %v203 = vld [vmem:[#allocation8] sm:$0xff]
    %v204 = vld [vmem:[#allocation8 + $0x8] sm:$0xff]
    %v205 = vld [vmem:[#allocation8 + $0x10] sm:$0xff]
    %v206 = vld [vmem:[#allocation8 + $0x18] sm:$0xff]
    %v207 = vld [vmem:[%s5] sm:$0x1]
    %v209 = vlaneseq
    %v210 = vshrl.u32 %v209, 7
    %v211 = vsub.s32 0, %v210
    %v212 = vrot.slane %v207, %v211
    %v215 = vsel %vm119, %v106, 0
    %v218 = vsel %vm119, %v107, 0
    %220 = vmatprep.subr.mxu0 0.0
    %221 = vmatpush1.msra.mxu0 0.0
    %222 = vmatprep.subr.mxu0 0.0
    %223 = vmatpush1.msra.mxu0 0.0
    %224 = vmatprep.subr.mxu0 0.0
    %225 = vmatpush1.msra.mxu0 0.0
    %226 = vmatprep.subr.mxu0 0.0
    %227 = vmatpush1.msra.mxu0 0.0
    %228 = vmatprep.subr.mxu0 0.0
    %229 = vmatpush1.msra.mxu0 0.0
    %230 = vmatprep.subr.mxu0 0.0
    %231 = vmatpush1.msra.mxu0 0.0
    %232 = vmatprep.subr.mxu0 0.0
    %233 = vmatpush1.msra.mxu0 0.0
    %234 = vmatprep.subr.mxu0 0.0
    %235 = vmatpush1.msra.mxu0 0.0
    %236 = vmatprep.subr.mxu0 0.0
    %237 = vmatpush1.msra.mxu0 0.0
    %238 = vmatprep.subr.mxu0 0.0
    %239 = vmatpush1.msra.mxu0 0.0
    %240 = vmatprep.subr.mxu0 0.0
    %241 = vmatpush1.msra.mxu0 0.0
    %242 = vmatprep.subr.mxu0 0.0
    %243 = vmatpush1.msra.mxu0 0.0
    %244 = vmatprep.subr.mxu0 0.0
    %245 = vmatpush1.msra.mxu0 %v206
    %246 = vmatprep.subr.mxu0 0.0
    %247 = vmatpush1.msra.mxu0 %v205
    %248 = vmatprep.subr.mxu0 0.0
    %249 = vmatpush1.msra.mxu0 %v204
    %250 = vmatprep.subr.mxu0 0.0
    %251 = vmatpush1.msra.mxu0 %v203
    %252 = vmatprep.subr.mxu0 0.0
    %253 = vmatpush2.msra.mxu0 0.0
    %254 = vmatprep.subr.mxu0 0.0
    %255 = vmatpush2.msra.mxu0 0.0
    %256 = vmatprep.subr.mxu0 0.0
    %257 = vmatpush2.msra.mxu0 0.0
    %258 = vmatprep.subr.mxu0 0.0
    %259 = vmatpush2.msra.mxu0 0.0
    %260 = vmatprep.subr.mxu0 0.0
    %261 = vmatpush2.msra.mxu0 0.0
    %262 = vmatprep.subr.mxu0 0.0
    %263 = vmatpush2.msra.mxu0 0.0
    %264 = vmatprep.subr.mxu0 0.0
    %265 = vmatpush2.msra.mxu0 0.0
    %266 = vmatprep.subr.mxu0 0.0
    %267 = vmatpush2.msra.mxu0 0.0
    %268 = vmatprep.subr.mxu0 0.0
    %269 = vmatpush2.msra.mxu0 0.0
    %270 = vmatprep.subr.mxu0 0.0
    %271 = vmatpush2.msra.mxu0 0.0
    %272 = vmatprep.subr.mxu0 0.0
    %273 = vmatpush2.msra.mxu0 0.0
    %274 = vmatprep.subr.mxu0 0.0
    %275 = vmatpush2.msra.mxu0 0.0
    %276 = vmatprep.subr.mxu0 0.0
    %277 = vmatpush2.msra.mxu0 0.0
    %278 = vmatprep.subr.mxu0 0.0
    %279 = vmatpush2.msra.mxu0 0.0
    %280 = vmatprep.subr.mxu0 0.0
    %281 = vmatpush2.msra.mxu0 0.0
    %282 = vmatprep.subr.mxu0 0.0
    %283 = vmatpush2.msra.mxu0 0.0
    %284 = vmatprep.mubr.f32.mxu0 0.0
    %285 = vmatmul.mubr.f32.gmra.mxu0 %v215
    %v286 = vpop.f32.mrf.mxu0
    %v287 = vadd.f32 %v212, %v286
    %v288 = vpop.f32.mrf.mxu0
    %289 = vmatprep.mubr.f32.mxu0 0.0
    %290 = vmatmul.mubr.f32.gmra.mxu0 %v218
    %v291 = vpop.f32.mrf.mxu0
    %v292 = vadd.f32 %v212, %v291
    %v293 = vpop.f32.mrf.mxu0
    %294 = vdwg.mxu0
    %v295 = vld [vmem:[#allocation10] sm:$0xff]
    %v296 = vld [vmem:[#allocation10 + $0x8] sm:$0xff]
    %v297 = vld [vmem:[#allocation10 + $0x10] sm:$0xff]
    %v298 = vld [vmem:[#allocation10 + $0x18] sm:$0xff]
    %vm299 = vcmask 64512
    %v301 = vsel %vm299, %v201, 0
    %v304 = vsel %vm299, %v287, 0
    %306 = vmatprep.subr.mxu0 0.0
    %307 = vmatpush1.xpose.msra.mxu0 0.0
    %308 = vmatprep.subr.mxu0 0.0
    %309 = vmatpush1.xpose.msra.mxu0 0.0
    %310 = vmatprep.subr.mxu0 0.0
    %311 = vmatpush1.xpose.msra.mxu0 0.0
    %312 = vmatprep.subr.mxu0 0.0
    %313 = vmatpush1.xpose.msra.mxu0 0.0
    %314 = vmatprep.subr.mxu0 0.0
    %315 = vmatpush1.xpose.msra.mxu0 0.0
    %316 = vmatprep.subr.mxu0 0.0
    %317 = vmatpush1.xpose.msra.mxu0 0.0
    %318 = vmatprep.subr.mxu0 0.0
    %319 = vmatpush1.xpose.msra.mxu0 0.0
    %320 = vmatprep.subr.mxu0 0.0
    %321 = vmatpush1.xpose.msra.mxu0 0.0
    %322 = vmatprep.subr.mxu0 0.0
    %323 = vmatpush1.xpose.msra.mxu0 0.0
    %324 = vmatprep.subr.mxu0 0.0
    %325 = vmatpush1.xpose.msra.mxu0 0.0
    %326 = vmatprep.subr.mxu0 0.0
    %327 = vmatpush1.xpose.msra.mxu0 0.0
    %328 = vmatprep.subr.mxu0 0.0
    %329 = vmatpush1.xpose.msra.mxu0 0.0
    %330 = vmatprep.subr.mxu0 0.0
    %331 = vmatpush1.xpose.msra.mxu0 0.0
    %332 = vmatprep.subr.mxu0 0.0
    %333 = vmatpush1.xpose.msra.mxu0 0.0
    %334 = vmatprep.subr.mxu0 0.0
    %335 = vmatpush1.xpose.msra.mxu0 0.0
    %336 = vmatprep.subr.mxu0 0.0
    %337 = vmatpush1.xpose.msra.mxu0 %v304
    %338 = vmatprep.subr.mxu0 0.0
    %339 = vmatpush2.xpose.msra.mxu0 0.0
    %340 = vmatprep.subr.mxu0 0.0
    %341 = vmatpush2.xpose.msra.mxu0 0.0
    %342 = vmatprep.subr.mxu0 0.0
    %343 = vmatpush2.xpose.msra.mxu0 0.0
    %344 = vmatprep.subr.mxu0 0.0
    %345 = vmatpush2.xpose.msra.mxu0 0.0
    %346 = vmatprep.subr.mxu0 0.0
    %347 = vmatpush2.xpose.msra.mxu0 0.0
    %348 = vmatprep.subr.mxu0 0.0
    %349 = vmatpush2.xpose.msra.mxu0 0.0
    %350 = vmatprep.subr.mxu0 0.0
    %351 = vmatpush2.xpose.msra.mxu0 0.0
    %352 = vmatprep.subr.mxu0 0.0
    %353 = vmatpush2.xpose.msra.mxu0 0.0
    %354 = vmatprep.subr.mxu0 0.0
    %355 = vmatpush2.xpose.msra.mxu0 0.0
    %356 = vmatprep.subr.mxu0 0.0
    %357 = vmatpush2.xpose.msra.mxu0 0.0
    %358 = vmatprep.subr.mxu0 0.0
    %359 = vmatpush2.xpose.msra.mxu0 0.0
    %360 = vmatprep.subr.mxu0 0.0
    %361 = vmatpush2.xpose.msra.mxu0 0.0
    %362 = vmatprep.subr.mxu0 0.0
    %363 = vmatpush2.xpose.msra.mxu0 0.0
    %364 = vmatprep.subr.mxu0 0.0
    %365 = vmatpush2.xpose.msra.mxu0 0.0
    %366 = vmatprep.subr.mxu0 0.0
    %367 = vmatpush2.xpose.msra.mxu0 0.0
    %368 = vmatprep.subr.mxu0 0.0
    %369 = vmatpush2.xpose.msra.mxu0 0.0
    %370 = vmatprep.mubr.f32.mxu0 0.0
    %371 = vmatmul.mubr.f32.gmra.mxu0 %v301
    %v372 = vpop.f32.mrf.mxu0
    %v373 = vadd.f32 0.0, %v372
    %v374 = vpop.f32.mrf.mxu0
    %375 = vdwg.mxu0
    %v377 = vsel %vm299, %v202, 0
    %v380 = vsel %vm299, %v292, 0
    %382 = vmatprep.subr.mxu0 0.0
    %383 = vmatpush1.xpose.msra.mxu0 0.0
    %384 = vmatprep.subr.mxu0 0.0
    %385 = vmatpush1.xpose.msra.mxu0 0.0
    %386 = vmatprep.subr.mxu0 0.0
    %387 = vmatpush1.xpose.msra.mxu0 0.0
    %388 = vmatprep.subr.mxu0 0.0
    %389 = vmatpush1.xpose.msra.mxu0 0.0
    %390 = vmatprep.subr.mxu0 0.0
    %391 = vmatpush1.xpose.msra.mxu0 0.0
    %392 = vmatprep.subr.mxu0 0.0
    %393 = vmatpush1.xpose.msra.mxu0 0.0
    %394 = vmatprep.subr.mxu0 0.0
    %395 = vmatpush1.xpose.msra.mxu0 0.0
    %396 = vmatprep.subr.mxu0 0.0
    %397 = vmatpush1.xpose.msra.mxu0 0.0
    %398 = vmatprep.subr.mxu0 0.0
    %399 = vmatpush1.xpose.msra.mxu0 0.0
    %400 = vmatprep.subr.mxu0 0.0
    %401 = vmatpush1.xpose.msra.mxu0 0.0
    %402 = vmatprep.subr.mxu0 0.0
    %403 = vmatpush1.xpose.msra.mxu0 0.0
    %404 = vmatprep.subr.mxu0 0.0
    %405 = vmatpush1.xpose.msra.mxu0 0.0
    %406 = vmatprep.subr.mxu0 0.0
    %407 = vmatpush1.xpose.msra.mxu0 0.0
    %408 = vmatprep.subr.mxu0 0.0
    %409 = vmatpush1.xpose.msra.mxu0 0.0
    %410 = vmatprep.subr.mxu0 0.0
    %411 = vmatpush1.xpose.msra.mxu0 0.0
    %412 = vmatprep.subr.mxu0 0.0
    %413 = vmatpush1.xpose.msra.mxu0 %v380
    %414 = vmatprep.subr.mxu0 0.0
    %415 = vmatpush2.xpose.msra.mxu0 0.0
    %416 = vmatprep.subr.mxu0 0.0
    %417 = vmatpush2.xpose.msra.mxu0 0.0
    %418 = vmatprep.subr.mxu0 0.0
    %419 = vmatpush2.xpose.msra.mxu0 0.0
    %420 = vmatprep.subr.mxu0 0.0
    %421 = vmatpush2.xpose.msra.mxu0 0.0
    %422 = vmatprep.subr.mxu0 0.0
    %423 = vmatpush2.xpose.msra.mxu0 0.0
    %424 = vmatprep.subr.mxu0 0.0
    %425 = vmatpush2.xpose.msra.mxu0 0.0
    %426 = vmatprep.subr.mxu0 0.0
    %427 = vmatpush2.xpose.msra.mxu0 0.0
    %428 = vmatprep.subr.mxu0 0.0
    %429 = vmatpush2.xpose.msra.mxu0 0.0
    %430 = vmatprep.subr.mxu0 0.0
    %431 = vmatpush2.xpose.msra.mxu0 0.0
    %432 = vmatprep.subr.mxu0 0.0
    %433 = vmatpush2.xpose.msra.mxu0 0.0
    %434 = vmatprep.subr.mxu0 0.0
    %435 = vmatpush2.xpose.msra.mxu0 0.0
    %436 = vmatprep.subr.mxu0 0.0
    %437 = vmatpush2.xpose.msra.mxu0 0.0
    %438 = vmatprep.subr.mxu0 0.0
    %439 = vmatpush2.xpose.msra.mxu0 0.0
    %440 = vmatprep.subr.mxu0 0.0
    %441 = vmatpush2.xpose.msra.mxu0 0.0
    %442 = vmatprep.subr.mxu0 0.0
    %443 = vmatpush2.xpose.msra.mxu0 0.0
    %444 = vmatprep.subr.mxu0 0.0
    %445 = vmatpush2.xpose.msra.mxu0 0.0
    %446 = vmatprep.mubr.f32.mxu0 0.0
    %447 = vmatmul.mubr.f32.gmra.mxu0 %v377
    %v448 = vpop.f32.mrf.mxu0
    %v449 = vadd.f32 0.0, %v448
    %v450 = vpop.f32.mrf.mxu0
    %451 = vdwg.mxu0
    %v452 = vsel %vm299, %v373, -inf
    %453 = vmax.xlane.f32.xlu0 %v452
    %v454 = vpop.xlane.xlu0 %453
    %v455 = vsel %vm299, %v449, -inf
    %456 = vmax.xlane.f32.xlu0 %v455
    %v457 = vpop.xlane.xlu0 %456
    %v458 = vsub.f32 %v373, %v454
    %v459 = vsub.f32 %v449, %v457
    %v460 = vmul.f32 %v458, 1.442695
    %v461 = vpow.pop %v460
    %v462 = vmul.f32 %v459, 1.442695
    %v463 = vpow.pop %v462
    %v464 = vsel %vm299, %v461, 0.0
    %465 = vadd.xlane.f32.xlu0 %v464
    %v466 = vpop.xlane.xlu0 %465
    %v467 = vsel %vm299, %v463, 0.0
    %468 = vadd.xlane.f32.xlu0 %v467
    %v469 = vpop.xlane.xlu0 %468
    %v470 = vrcp.pop %v466
    %v471 = vrcp.pop %v469
    %v472 = vmul.f32 %v461, %v470
    %v473 = vmul.f32 %v463, %v471
    %474 = vrot.lane.b32.xlu0 %v287, 96
    %v475 = vpop.permute.xlu0 %474
    %v478 = vsel %vm299, %v472, 0
    %480 = vmatprep.subr.mxu0 0.0
    %481 = vmatpush1.msra.mxu0 0.0
    %482 = vmatprep.subr.mxu0 0.0
    %483 = vmatpush1.msra.mxu0 0.0
    %484 = vmatprep.subr.mxu0 0.0
    %485 = vmatpush1.msra.mxu0 0.0
    %486 = vmatprep.subr.mxu0 0.0
    %487 = vmatpush1.msra.mxu0 0.0
    %488 = vmatprep.subr.mxu0 0.0
    %489 = vmatpush1.msra.mxu0 0.0
    %490 = vmatprep.subr.mxu0 0.0
    %491 = vmatpush1.msra.mxu0 0.0
    %492 = vmatprep.subr.mxu0 0.0
    %493 = vmatpush1.msra.mxu0 0.0
    %494 = vmatprep.subr.mxu0 0.0
    %495 = vmatpush1.msra.mxu0 0.0
    %496 = vmatprep.subr.mxu0 0.0
    %497 = vmatpush1.msra.mxu0 0.0
    %498 = vmatprep.subr.mxu0 0.0
    %499 = vmatpush1.msra.mxu0 0.0
    %500 = vmatprep.subr.mxu0 0.0
    %501 = vmatpush1.msra.mxu0 0.0
    %502 = vmatprep.subr.mxu0 0.0
    %503 = vmatpush1.msra.mxu0 0.0
    %504 = vmatprep.subr.mxu0 0.0
    %505 = vmatpush1.msra.mxu0 0.0
    %506 = vmatprep.subr.mxu0 0.0
    %507 = vmatpush1.msra.mxu0 0.0
    %508 = vmatprep.subr.mxu0 0.0
    %509 = vmatpush1.msra.mxu0 0.0
    %510 = vmatprep.subr.mxu0 0.0
    %511 = vmatpush1.msra.mxu0 %v475
    %512 = vmatprep.subr.mxu0 0.0
    %513 = vmatpush2.msra.mxu0 0.0
    %514 = vmatprep.subr.mxu0 0.0
    %515 = vmatpush2.msra.mxu0 0.0
    %516 = vmatprep.subr.mxu0 0.0
    %517 = vmatpush2.msra.mxu0 0.0
    %518 = vmatprep.subr.mxu0 0.0
    %519 = vmatpush2.msra.mxu0 0.0
    %520 = vmatprep.subr.mxu0 0.0
    %521 = vmatpush2.msra.mxu0 0.0
    %522 = vmatprep.subr.mxu0 0.0
    %523 = vmatpush2.msra.mxu0 0.0
    %524 = vmatprep.subr.mxu0 0.0
    %525 = vmatpush2.msra.mxu0 0.0
    %526 = vmatprep.subr.mxu0 0.0
    %527 = vmatpush2.msra.mxu0 0.0
    %528 = vmatprep.subr.mxu0 0.0
    %529 = vmatpush2.msra.mxu0 0.0
    %530 = vmatprep.subr.mxu0 0.0
    %531 = vmatpush2.msra.mxu0 0.0
    %532 = vmatprep.subr.mxu0 0.0
    %533 = vmatpush2.msra.mxu0 0.0
    %534 = vmatprep.subr.mxu0 0.0
    %535 = vmatpush2.msra.mxu0 0.0
    %536 = vmatprep.subr.mxu0 0.0
    %537 = vmatpush2.msra.mxu0 0.0
    %538 = vmatprep.subr.mxu0 0.0
    %539 = vmatpush2.msra.mxu0 0.0
    %540 = vmatprep.subr.mxu0 0.0
    %541 = vmatpush2.msra.mxu0 0.0
    %542 = vmatprep.subr.mxu0 0.0
    %543 = vmatpush2.msra.mxu0 0.0
    %544 = vmatprep.mubr.f32.mxu0 0.0
    %545 = vmatmul.mubr.f32.gmra.mxu0 %v478
    %v546 = vpop.f32.mrf.mxu0
    %v547 = vadd.f32 0.0, %v546
    %v548 = vpop.f32.mrf.mxu0
    %549 = vdwg.mxu0
    %550 = vrot.lane.b32.xlu0 %v292, 96
    %v551 = vpop.permute.xlu0 %550
    %v554 = vsel %vm299, %v473, 0
    %556 = vmatprep.subr.mxu0 0.0
    %557 = vmatpush1.msra.mxu0 0.0
    %558 = vmatprep.subr.mxu0 0.0
    %559 = vmatpush1.msra.mxu0 0.0
    %560 = vmatprep.subr.mxu0 0.0
    %561 = vmatpush1.msra.mxu0 0.0
    %562 = vmatprep.subr.mxu0 0.0
    %563 = vmatpush1.msra.mxu0 0.0
    %564 = vmatprep.subr.mxu0 0.0
    %565 = vmatpush1.msra.mxu0 0.0
    %566 = vmatprep.subr.mxu0 0.0
    %567 = vmatpush1.msra.mxu0 0.0
    %568 = vmatprep.subr.mxu0 0.0
    %569 = vmatpush1.msra.mxu0 0.0
    %570 = vmatprep.subr.mxu0 0.0
    %571 = vmatpush1.msra.mxu0 0.0
    %572 = vmatprep.subr.mxu0 0.0
    %573 = vmatpush1.msra.mxu0 0.0
    %574 = vmatprep.subr.mxu0 0.0
    %575 = vmatpush1.msra.mxu0 0.0
    %576 = vmatprep.subr.mxu0 0.0
    %577 = vmatpush1.msra.mxu0 0.0
    %578 = vmatprep.subr.mxu0 0.0
    %579 = vmatpush1.msra.mxu0 0.0
    %580 = vmatprep.subr.mxu0 0.0
    %581 = vmatpush1.msra.mxu0 0.0
    %582 = vmatprep.subr.mxu0 0.0
    %583 = vmatpush1.msra.mxu0 0.0
    %584 = vmatprep.subr.mxu0 0.0
    %585 = vmatpush1.msra.mxu0 0.0
    %586 = vmatprep.subr.mxu0 0.0
    %587 = vmatpush1.msra.mxu0 %v551
    %588 = vmatprep.subr.mxu0 0.0
    %589 = vmatpush2.msra.mxu0 0.0
    %590 = vmatprep.subr.mxu0 0.0
    %591 = vmatpush2.msra.mxu0 0.0
    %592 = vmatprep.subr.mxu0 0.0
    %593 = vmatpush2.msra.mxu0 0.0
    %594 = vmatprep.subr.mxu0 0.0
    %595 = vmatpush2.msra.mxu0 0.0
    %596 = vmatprep.subr.mxu0 0.0
    %597 = vmatpush2.msra.mxu0 0.0
    %598 = vmatprep.subr.mxu0 0.0
    %599 = vmatpush2.msra.mxu0 0.0
    %600 = vmatprep.subr.mxu0 0.0
    %601 = vmatpush2.msra.mxu0 0.0
    %602 = vmatprep.subr.mxu0 0.0
    %603 = vmatpush2.msra.mxu0 0.0
    %604 = vmatprep.subr.mxu0 0.0
    %605 = vmatpush2.msra.mxu0 0.0
    %606 = vmatprep.subr.mxu0 0.0
    %607 = vmatpush2.msra.mxu0 0.0
    %608 = vmatprep.subr.mxu0 0.0
    %609 = vmatpush2.msra.mxu0 0.0
    %610 = vmatprep.subr.mxu0 0.0
    %611 = vmatpush2.msra.mxu0 0.0
    %612 = vmatprep.subr.mxu0 0.0
    %613 = vmatpush2.msra.mxu0 0.0
    %614 = vmatprep.subr.mxu0 0.0
    %615 = vmatpush2.msra.mxu0 0.0
    %616 = vmatprep.subr.mxu0 0.0
    %617 = vmatpush2.msra.mxu0 0.0
    %618 = vmatprep.subr.mxu0 0.0
    %619 = vmatpush2.msra.mxu0 0.0
    %620 = vmatprep.mubr.f32.mxu0 0.0
    %621 = vmatmul.mubr.f32.gmra.mxu0 %v554
    %v622 = vpop.f32.mrf.mxu0
    %v623 = vadd.f32 0.0, %v622
    %v624 = vpop.f32.mrf.mxu0
    %625 = vdwg.mxu0
    %626 = vrot.lane.b32.xlu0 %v201, 120
    %v627 = vpop.permute.xlu0 %626
    %628 = vrot.lane.b32.xlu0 %v287, 120
    %v629 = vpop.permute.xlu0 %628
    %v630 = vsel %vm299, %v627, 0
    %v632 = vsel %vm299, %v629, 0
    %634 = vmatprep.subr.mxu0 0.0
    %635 = vmatpush1.xpose.msra.mxu0 0.0
    %636 = vmatprep.subr.mxu0 0.0
    %637 = vmatpush1.xpose.msra.mxu0 0.0
    %638 = vmatprep.subr.mxu0 0.0
    %639 = vmatpush1.xpose.msra.mxu0 0.0
    %640 = vmatprep.subr.mxu0 0.0
    %641 = vmatpush1.xpose.msra.mxu0 0.0
    %642 = vmatprep.subr.mxu0 0.0
    %643 = vmatpush1.xpose.msra.mxu0 0.0
    %644 = vmatprep.subr.mxu0 0.0
    %645 = vmatpush1.xpose.msra.mxu0 0.0
    %646 = vmatprep.subr.mxu0 0.0
    %647 = vmatpush1.xpose.msra.mxu0 0.0
    %648 = vmatprep.subr.mxu0 0.0
    %649 = vmatpush1.xpose.msra.mxu0 0.0
    %650 = vmatprep.subr.mxu0 0.0
    %651 = vmatpush1.xpose.msra.mxu0 0.0
    %652 = vmatprep.subr.mxu0 0.0
    %653 = vmatpush1.xpose.msra.mxu0 0.0
    %654 = vmatprep.subr.mxu0 0.0
    %655 = vmatpush1.xpose.msra.mxu0 0.0
    %656 = vmatprep.subr.mxu0 0.0
    %657 = vmatpush1.xpose.msra.mxu0 0.0
    %658 = vmatprep.subr.mxu0 0.0
    %659 = vmatpush1.xpose.msra.mxu0 0.0
    %660 = vmatprep.subr.mxu0 0.0
    %661 = vmatpush1.xpose.msra.mxu0 0.0
    %662 = vmatprep.subr.mxu0 0.0
    %663 = vmatpush1.xpose.msra.mxu0 0.0
    %664 = vmatprep.subr.mxu0 0.0
    %665 = vmatpush1.xpose.msra.mxu0 %v632
    %666 = vmatprep.subr.mxu0 0.0
    %667 = vmatpush2.xpose.msra.mxu0 0.0
    %668 = vmatprep.subr.mxu0 0.0
    %669 = vmatpush2.xpose.msra.mxu0 0.0
    %670 = vmatprep.subr.mxu0 0.0
    %671 = vmatpush2.xpose.msra.mxu0 0.0
    %672 = vmatprep.subr.mxu0 0.0
    %673 = vmatpush2.xpose.msra.mxu0 0.0
    %674 = vmatprep.subr.mxu0 0.0
    %675 = vmatpush2.xpose.msra.mxu0 0.0
    %676 = vmatprep.subr.mxu0 0.0
    %677 = vmatpush2.xpose.msra.mxu0 0.0
    %678 = vmatprep.subr.mxu0 0.0
    %679 = vmatpush2.xpose.msra.mxu0 0.0
    %680 = vmatprep.subr.mxu0 0.0
    %681 = vmatpush2.xpose.msra.mxu0 0.0
    %682 = vmatprep.subr.mxu0 0.0
    %683 = vmatpush2.xpose.msra.mxu0 0.0
    %684 = vmatprep.subr.mxu0 0.0
    %685 = vmatpush2.xpose.msra.mxu0 0.0
    %686 = vmatprep.subr.mxu0 0.0
    %687 = vmatpush2.xpose.msra.mxu0 0.0
    %688 = vmatprep.subr.mxu0 0.0
    %689 = vmatpush2.xpose.msra.mxu0 0.0
    %690 = vmatprep.subr.mxu0 0.0
    %691 = vmatpush2.xpose.msra.mxu0 0.0
    %692 = vmatprep.subr.mxu0 0.0
    %693 = vmatpush2.xpose.msra.mxu0 0.0
    %694 = vmatprep.subr.mxu0 0.0
    %695 = vmatpush2.xpose.msra.mxu0 0.0
    %696 = vmatprep.subr.mxu0 0.0
    %697 = vmatpush2.xpose.msra.mxu0 0.0
    %698 = vmatprep.mubr.f32.mxu0 0.0
    %699 = vmatmul.mubr.f32.gmra.mxu0 %v630
    %v700 = vpop.f32.mrf.mxu0
    %v701 = vadd.f32 0.0, %v700
    %v702 = vpop.f32.mrf.mxu0
    %703 = vdwg.mxu0
    %704 = vrot.lane.b32.xlu0 %v202, 120
    %v705 = vpop.permute.xlu0 %704
    %706 = vrot.lane.b32.xlu0 %v292, 120
    %v707 = vpop.permute.xlu0 %706
    %v708 = vsel %vm299, %v705, 0
    %v710 = vsel %vm299, %v707, 0
    %712 = vmatprep.subr.mxu0 0.0
    %713 = vmatpush1.xpose.msra.mxu0 0.0
    %714 = vmatprep.subr.mxu0 0.0
    %715 = vmatpush1.xpose.msra.mxu0 0.0
    %716 = vmatprep.subr.mxu0 0.0
    %717 = vmatpush1.xpose.msra.mxu0 0.0
    %718 = vmatprep.subr.mxu0 0.0
    %719 = vmatpush1.xpose.msra.mxu0 0.0
    %720 = vmatprep.subr.mxu0 0.0
    %721 = vmatpush1.xpose.msra.mxu0 0.0
    %722 = vmatprep.subr.mxu0 0.0
    %723 = vmatpush1.xpose.msra.mxu0 0.0
    %724 = vmatprep.subr.mxu0 0.0
    %725 = vmatpush1.xpose.msra.mxu0 0.0
    %726 = vmatprep.subr.mxu0 0.0
    %727 = vmatpush1.xpose.msra.mxu0 0.0
    %728 = vmatprep.subr.mxu0 0.0
    %729 = vmatpush1.xpose.msra.mxu0 0.0
    %730 = vmatprep.subr.mxu0 0.0
    %731 = vmatpush1.xpose.msra.mxu0 0.0
    %732 = vmatprep.subr.mxu0 0.0
    %733 = vmatpush1.xpose.msra.mxu0 0.0
    %734 = vmatprep.subr.mxu0 0.0
    %735 = vmatpush1.xpose.msra.mxu0 0.0
    %736 = vmatprep.subr.mxu0 0.0
    %737 = vmatpush1.xpose.msra.mxu0 0.0
    %738 = vmatprep.subr.mxu0 0.0
    %739 = vmatpush1.xpose.msra.mxu0 0.0
    %740 = vmatprep.subr.mxu0 0.0
    %741 = vmatpush1.xpose.msra.mxu0 0.0
    %742 = vmatprep.subr.mxu0 0.0
    %743 = vmatpush1.xpose.msra.mxu0 %v710
    %744 = vmatprep.subr.mxu0 0.0
    %745 = vmatpush2.xpose.msra.mxu0 0.0
    %746 = vmatprep.subr.mxu0 0.0
    %747 = vmatpush2.xpose.msra.mxu0 0.0
    %748 = vmatprep.subr.mxu0 0.0
    %749 = vmatpush2.xpose.msra.mxu0 0.0
    %750 = vmatprep.subr.mxu0 0.0
    %751 = vmatpush2.xpose.msra.mxu0 0.0
    %752 = vmatprep.subr.mxu0 0.0
    %753 = vmatpush2.xpose.msra.mxu0 0.0
    %754 = vmatprep.subr.mxu0 0.0
    %755 = vmatpush2.xpose.msra.mxu0 0.0
    %756 = vmatprep.subr.mxu0 0.0
    %757 = vmatpush2.xpose.msra.mxu0 0.0
    %758 = vmatprep.subr.mxu0 0.0
    %759 = vmatpush2.xpose.msra.mxu0 0.0
    %760 = vmatprep.subr.mxu0 0.0
    %761 = vmatpush2.xpose.msra.mxu0 0.0
    %762 = vmatprep.subr.mxu0 0.0
    %763 = vmatpush2.xpose.msra.mxu0 0.0
    %764 = vmatprep.subr.mxu0 0.0
    %765 = vmatpush2.xpose.msra.mxu0 0.0
    %766 = vmatprep.subr.mxu0 0.0
    %767 = vmatpush2.xpose.msra.mxu0 0.0
    %768 = vmatprep.subr.mxu0 0.0
    %769 = vmatpush2.xpose.msra.mxu0 0.0
    %770 = vmatprep.subr.mxu0 0.0
    %771 = vmatpush2.xpose.msra.mxu0 0.0
    %772 = vmatprep.subr.mxu0 0.0
    %773 = vmatpush2.xpose.msra.mxu0 0.0
    %774 = vmatprep.subr.mxu0 0.0
    %775 = vmatpush2.xpose.msra.mxu0 0.0
    %776 = vmatprep.mubr.f32.mxu0 0.0
    %777 = vmatmul.mubr.f32.gmra.mxu0 %v708
    %v778 = vpop.f32.mrf.mxu0
    %v779 = vadd.f32 0.0, %v778
    %v780 = vpop.f32.mrf.mxu0
    %781 = vdwg.mxu0
    %v782 = vsel %vm299, %v701, -inf
    %783 = vmax.xlane.f32.xlu0 %v782
    %v784 = vpop.xlane.xlu0 %783
    %v785 = vsel %vm299, %v779, -inf
    %786 = vmax.xlane.f32.xlu0 %v785
    %v787 = vpop.xlane.xlu0 %786
    %v788 = vsub.f32 %v701, %v784
    %v789 = vsub.f32 %v779, %v787
    %v790 = vmul.f32 %v788, 1.442695
    %v791 = vpow.pop %v790
    %v792 = vmul.f32 %v789, 1.442695
    %v793 = vpow.pop %v792
    %v794 = vsel %vm299, %v791, 0.0
    %795 = vadd.xlane.f32.xlu0 %v794
    %v796 = vpop.xlane.xlu0 %795
    %v797 = vsel %vm299, %v793, 0.0
    %798 = vadd.xlane.f32.xlu0 %v797
    %v799 = vpop.xlane.xlu0 %798
    %v800 = vrcp.pop %v796
    %v801 = vrcp.pop %v799
    %v802 = vmul.f32 %v791, %v800
    %v803 = vmul.f32 %v793, %v801
    %804 = vrot.lane.b32.xlu0 %v287, 88
    %v805 = vpop.permute.xlu0 %804
    %v808 = vsel %vm299, %v802, 0
    %810 = vmatprep.subr.mxu0 0.0
    %811 = vmatpush1.msra.mxu0 0.0
    %812 = vmatprep.subr.mxu0 0.0
    %813 = vmatpush1.msra.mxu0 0.0
    %814 = vmatprep.subr.mxu0 0.0
    %815 = vmatpush1.msra.mxu0 0.0
    %816 = vmatprep.subr.mxu0 0.0
    %817 = vmatpush1.msra.mxu0 0.0
    %818 = vmatprep.subr.mxu0 0.0
    %819 = vmatpush1.msra.mxu0 0.0
    %820 = vmatprep.subr.mxu0 0.0
    %821 = vmatpush1.msra.mxu0 0.0
    %822 = vmatprep.subr.mxu0 0.0
    %823 = vmatpush1.msra.mxu0 0.0
    %824 = vmatprep.subr.mxu0 0.0
    %825 = vmatpush1.msra.mxu0 0.0
    %826 = vmatprep.subr.mxu0 0.0
    %827 = vmatpush1.msra.mxu0 0.0
    %828 = vmatprep.subr.mxu0 0.0
    %829 = vmatpush1.msra.mxu0 0.0
    %830 = vmatprep.subr.mxu0 0.0
    %831 = vmatpush1.msra.mxu0 0.0
    %832 = vmatprep.subr.mxu0 0.0
    %833 = vmatpush1.msra.mxu0 0.0
    %834 = vmatprep.subr.mxu0 0.0
    %835 = vmatpush1.msra.mxu0 0.0
    %836 = vmatprep.subr.mxu0 0.0
    %837 = vmatpush1.msra.mxu0 0.0
    %838 = vmatprep.subr.mxu0 0.0
    %839 = vmatpush1.msra.mxu0 0.0
    %840 = vmatprep.subr.mxu0 0.0
    %841 = vmatpush1.msra.mxu0 %v805
    %842 = vmatprep.subr.mxu0 0.0
    %843 = vmatpush2.msra.mxu0 0.0
    %844 = vmatprep.subr.mxu0 0.0
    %845 = vmatpush2.msra.mxu0 0.0
    %846 = vmatprep.subr.mxu0 0.0
    %847 = vmatpush2.msra.mxu0 0.0
    %848 = vmatprep.subr.mxu0 0.0
    %849 = vmatpush2.msra.mxu0 0.0
    %850 = vmatprep.subr.mxu0 0.0
    %851 = vmatpush2.msra.mxu0 0.0
    %852 = vmatprep.subr.mxu0 0.0
    %853 = vmatpush2.msra.mxu0 0.0
    %854 = vmatprep.subr.mxu0 0.0
    %855 = vmatpush2.msra.mxu0 0.0
    %856 = vmatprep.subr.mxu0 0.0
    %857 = vmatpush2.msra.mxu0 0.0
    %858 = vmatprep.subr.mxu0 0.0
    %859 = vmatpush2.msra.mxu0 0.0
    %860 = vmatprep.subr.mxu0 0.0
    %861 = vmatpush2.msra.mxu0 0.0
    %862 = vmatprep.subr.mxu0 0.0
    %863 = vmatpush2.msra.mxu0 0.0
    %864 = vmatprep.subr.mxu0 0.0
    %865 = vmatpush2.msra.mxu0 0.0
    %866 = vmatprep.subr.mxu0 0.0
    %867 = vmatpush2.msra.mxu0 0.0
    %868 = vmatprep.subr.mxu0 0.0
    %869 = vmatpush2.msra.mxu0 0.0
    %870 = vmatprep.subr.mxu0 0.0
    %871 = vmatpush2.msra.mxu0 0.0
    %872 = vmatprep.subr.mxu0 0.0
    %873 = vmatpush2.msra.mxu0 0.0
    %874 = vmatprep.mubr.f32.mxu0 0.0
    %875 = vmatmul.mubr.f32.gmra.mxu0 %v808
    %v876 = vpop.f32.mrf.mxu0
    %v877 = vadd.f32 0.0, %v876
    %v878 = vpop.f32.mrf.mxu0
    %879 = vdwg.mxu0
    %880 = vrot.lane.b32.xlu0 %v292, 88
    %v881 = vpop.permute.xlu0 %880
    %v884 = vsel %vm299, %v803, 0
    %886 = vmatprep.subr.mxu0 0.0
    %887 = vmatpush1.msra.mxu0 0.0
    %888 = vmatprep.subr.mxu0 0.0
    %889 = vmatpush1.msra.mxu0 0.0
    %890 = vmatprep.subr.mxu0 0.0
    %891 = vmatpush1.msra.mxu0 0.0
    %892 = vmatprep.subr.mxu0 0.0
    %893 = vmatpush1.msra.mxu0 0.0
    %894 = vmatprep.subr.mxu0 0.0
    %895 = vmatpush1.msra.mxu0 0.0
    %896 = vmatprep.subr.mxu0 0.0
    %897 = vmatpush1.msra.mxu0 0.0
    %898 = vmatprep.subr.mxu0 0.0
    %899 = vmatpush1.msra.mxu0 0.0
    %900 = vmatprep.subr.mxu0 0.0
    %901 = vmatpush1.msra.mxu0 0.0
    %902 = vmatprep.subr.mxu0 0.0
    %903 = vmatpush1.msra.mxu0 0.0
    %904 = vmatprep.subr.mxu0 0.0
    %905 = vmatpush1.msra.mxu0 0.0
    %906 = vmatprep.subr.mxu0 0.0
    %907 = vmatpush1.msra.mxu0 0.0
    %908 = vmatprep.subr.mxu0 0.0
    %909 = vmatpush1.msra.mxu0 0.0
    %910 = vmatprep.subr.mxu0 0.0
    %911 = vmatpush1.msra.mxu0 0.0
    %912 = vmatprep.subr.mxu0 0.0
    %913 = vmatpush1.msra.mxu0 0.0
    %914 = vmatprep.subr.mxu0 0.0
    %915 = vmatpush1.msra.mxu0 0.0
    %916 = vmatprep.subr.mxu0 0.0
    %917 = vmatpush1.msra.mxu0 %v881
    %918 = vmatprep.subr.mxu0 0.0
    %919 = vmatpush2.msra.mxu0 0.0
    %920 = vmatprep.subr.mxu0 0.0
    %921 = vmatpush2.msra.mxu0 0.0
    %922 = vmatprep.subr.mxu0 0.0
    %923 = vmatpush2.msra.mxu0 0.0
    %924 = vmatprep.subr.mxu0 0.0
    %925 = vmatpush2.msra.mxu0 0.0
    %926 = vmatprep.subr.mxu0 0.0
    %927 = vmatpush2.msra.mxu0 0.0
    %928 = vmatprep.subr.mxu0 0.0
    %929 = vmatpush2.msra.mxu0 0.0
    %930 = vmatprep.subr.mxu0 0.0
    %931 = vmatpush2.msra.mxu0 0.0
    %932 = vmatprep.subr.mxu0 0.0
    %933 = vmatpush2.msra.mxu0 0.0
    %934 = vmatprep.subr.mxu0 0.0
    %935 = vmatpush2.msra.mxu0 0.0
    %936 = vmatprep.subr.mxu0 0.0
    %937 = vmatpush2.msra.mxu0 0.0
    %938 = vmatprep.subr.mxu0 0.0
    %939 = vmatpush2.msra.mxu0 0.0
    %940 = vmatprep.subr.mxu0 0.0
    %941 = vmatpush2.msra.mxu0 0.0
    %942 = vmatprep.subr.mxu0 0.0
    %943 = vmatpush2.msra.mxu0 0.0
    %944 = vmatprep.subr.mxu0 0.0
    %945 = vmatpush2.msra.mxu0 0.0
    %946 = vmatprep.subr.mxu0 0.0
    %947 = vmatpush2.msra.mxu0 0.0
    %948 = vmatprep.subr.mxu0 0.0
    %949 = vmatpush2.msra.mxu0 0.0
    %950 = vmatprep.mubr.f32.mxu0 0.0
    %951 = vmatmul.mubr.f32.gmra.mxu0 %v884
    %v952 = vpop.f32.mrf.mxu0
    %v953 = vadd.f32 0.0, %v952
    %v954 = vpop.f32.mrf.mxu0
    %955 = vdwg.mxu0
    %v957 = vsel %vm299, %v877, 0
    %v960 = vsel %vm299, %v953, 0
    %962 = vmatprep.subr.mxu0 0.0
    %963 = vmatpush1.msra.mxu0 0.0
    %964 = vmatprep.subr.mxu0 0.0
    %965 = vmatpush1.msra.mxu0 0.0
    %966 = vmatprep.subr.mxu0 0.0
    %967 = vmatpush1.msra.mxu0 0.0
    %968 = vmatprep.subr.mxu0 0.0
    %969 = vmatpush1.msra.mxu0 0.0
    %970 = vmatprep.subr.mxu0 0.0
    %971 = vmatpush1.msra.mxu0 0.0
    %972 = vmatprep.subr.mxu0 0.0
    %973 = vmatpush1.msra.mxu0 0.0
    %974 = vmatprep.subr.mxu0 0.0
    %975 = vmatpush1.msra.mxu0 0.0
    %976 = vmatprep.subr.mxu0 0.0
    %977 = vmatpush1.msra.mxu0 0.0
    %978 = vmatprep.subr.mxu0 0.0
    %979 = vmatpush1.msra.mxu0 0.0
    %980 = vmatprep.subr.mxu0 0.0
    %981 = vmatpush1.msra.mxu0 0.0
    %982 = vmatprep.subr.mxu0 0.0
    %983 = vmatpush1.msra.mxu0 0.0
    %984 = vmatprep.subr.mxu0 0.0
    %985 = vmatpush1.msra.mxu0 0.0
    %986 = vmatprep.subr.mxu0 0.0
    %987 = vmatpush1.msra.mxu0 0.0
    %988 = vmatprep.subr.mxu0 0.0
    %989 = vmatpush1.msra.mxu0 0.0
    %990 = vmatprep.subr.mxu0 0.0
    %991 = vmatpush1.msra.mxu0 0.0
    %992 = vmatprep.subr.mxu0 0.0
    %993 = vmatpush1.msra.mxu0 %v296
    %994 = vmatprep.subr.mxu0 0.0
    %995 = vmatpush2.msra.mxu0 0.0
    %996 = vmatprep.subr.mxu0 0.0
    %997 = vmatpush2.msra.mxu0 0.0
    %998 = vmatprep.subr.mxu0 0.0
    %999 = vmatpush2.msra.mxu0 0.0
    %1000 = vmatprep.subr.mxu0 0.0
    %1001 = vmatpush2.msra.mxu0 0.0
    %1002 = vmatprep.subr.mxu0 0.0
    %1003 = vmatpush2.msra.mxu0 0.0
    %1004 = vmatprep.subr.mxu0 0.0
    %1005 = vmatpush2.msra.mxu0 0.0
    %1006 = vmatprep.subr.mxu0 0.0
    %1007 = vmatpush2.msra.mxu0 0.0
    %1008 = vmatprep.subr.mxu0 0.0
    %1009 = vmatpush2.msra.mxu0 0.0
    %1010 = vmatprep.subr.mxu0 0.0
    %1011 = vmatpush2.msra.mxu0 0.0
    %1012 = vmatprep.subr.mxu0 0.0
    %1013 = vmatpush2.msra.mxu0 0.0
    %1014 = vmatprep.subr.mxu0 0.0
    %1015 = vmatpush2.msra.mxu0 0.0
    %1016 = vmatprep.subr.mxu0 0.0
    %1017 = vmatpush2.msra.mxu0 0.0
    %1018 = vmatprep.subr.mxu0 0.0
    %1019 = vmatpush2.msra.mxu0 0.0
    %1020 = vmatprep.subr.mxu0 0.0
    %1021 = vmatpush2.msra.mxu0 0.0
    %1022 = vmatprep.subr.mxu0 0.0
    %1023 = vmatpush2.msra.mxu0 0.0
    %1024 = vmatprep.subr.mxu0 0.0
    %1025 = vmatpush2.msra.mxu0 0.0
    %1026 = vmatprep.mubr.f32.mxu0 0.0
    %1027 = vmatmul.mubr.f32.gmra.mxu0 %v957
    %v1028 = vpop.f32.mrf.mxu0
    %v1029 = vadd.f32 0.0, %v1028
    %v1030 = vpop.f32.mrf.mxu0
    %1031 = vmatprep.mubr.f32.mxu0 0.0
    %1032 = vmatmul.mubr.f32.gmra.mxu0 %v960
    %v1033 = vpop.f32.mrf.mxu0
    %v1034 = vadd.f32 0.0, %v1033
    %v1035 = vpop.f32.mrf.mxu0
    %1036 = vdwg.mxu0
    %v1038 = vsel %vm299, %v547, 0
    %v1041 = vsel %vm299, %v623, 0
    %1043 = vmatprep.subr.mxu0 0.0
    %1044 = vmatpush1.msra.mxu0 0.0
    %1045 = vmatprep.subr.mxu0 0.0
    %1046 = vmatpush1.msra.mxu0 0.0
    %1047 = vmatprep.subr.mxu0 0.0
    %1048 = vmatpush1.msra.mxu0 0.0
    %1049 = vmatprep.subr.mxu0 0.0
    %1050 = vmatpush1.msra.mxu0 0.0
    %1051 = vmatprep.subr.mxu0 0.0
    %1052 = vmatpush1.msra.mxu0 0.0
    %1053 = vmatprep.subr.mxu0 0.0
    %1054 = vmatpush1.msra.mxu0 0.0
    %1055 = vmatprep.subr.mxu0 0.0
    %1056 = vmatpush1.msra.mxu0 0.0
    %1057 = vmatprep.subr.mxu0 0.0
    %1058 = vmatpush1.msra.mxu0 0.0
    %1059 = vmatprep.subr.mxu0 0.0
    %1060 = vmatpush1.msra.mxu0 0.0
    %1061 = vmatprep.subr.mxu0 0.0
    %1062 = vmatpush1.msra.mxu0 0.0
    %1063 = vmatprep.subr.mxu0 0.0
    %1064 = vmatpush1.msra.mxu0 0.0
    %1065 = vmatprep.subr.mxu0 0.0
    %1066 = vmatpush1.msra.mxu0 0.0
    %1067 = vmatprep.subr.mxu0 0.0
    %1068 = vmatpush1.msra.mxu0 0.0
    %1069 = vmatprep.subr.mxu0 0.0
    %1070 = vmatpush1.msra.mxu0 0.0
    %1071 = vmatprep.subr.mxu0 0.0
    %1072 = vmatpush1.msra.mxu0 0.0
    %1073 = vmatprep.subr.mxu0 0.0
    %1074 = vmatpush1.msra.mxu0 %v295
    %1075 = vmatprep.subr.mxu0 0.0
    %1076 = vmatpush2.msra.mxu0 0.0
    %1077 = vmatprep.subr.mxu0 0.0
    %1078 = vmatpush2.msra.mxu0 0.0
    %1079 = vmatprep.subr.mxu0 0.0
    %1080 = vmatpush2.msra.mxu0 0.0
    %1081 = vmatprep.subr.mxu0 0.0
    %1082 = vmatpush2.msra.mxu0 0.0
    %1083 = vmatprep.subr.mxu0 0.0
    %1084 = vmatpush2.msra.mxu0 0.0
    %1085 = vmatprep.subr.mxu0 0.0
    %1086 = vmatpush2.msra.mxu0 0.0
    %1087 = vmatprep.subr.mxu0 0.0
    %1088 = vmatpush2.msra.mxu0 0.0
    %1089 = vmatprep.subr.mxu0 0.0
    %1090 = vmatpush2.msra.mxu0 0.0
    %1091 = vmatprep.subr.mxu0 0.0
    %1092 = vmatpush2.msra.mxu0 0.0
    %1093 = vmatprep.subr.mxu0 0.0
    %1094 = vmatpush2.msra.mxu0 0.0
    %1095 = vmatprep.subr.mxu0 0.0
    %1096 = vmatpush2.msra.mxu0 0.0
    %1097 = vmatprep.subr.mxu0 0.0
    %1098 = vmatpush2.msra.mxu0 0.0
    %1099 = vmatprep.subr.mxu0 0.0
    %1100 = vmatpush2.msra.mxu0 0.0
    %1101 = vmatprep.subr.mxu0 0.0
    %1102 = vmatpush2.msra.mxu0 0.0
    %1103 = vmatprep.subr.mxu0 0.0
    %1104 = vmatpush2.msra.mxu0 0.0
    %1105 = vmatprep.subr.mxu0 0.0
    %1106 = vmatpush2.msra.mxu0 0.0
    %1107 = vmatprep.mubr.f32.mxu0 0.0
    %1108 = vmatmul.mubr.f32.gmra.mxu0 %v1038
    %v1109 = vpop.f32.mrf.mxu0
    %v1110 = vadd.f32 %v1029, %v1109
    %v1111 = vpop.f32.mrf.mxu0
    %1112 = vmatprep.mubr.f32.mxu0 0.0
    %1113 = vmatmul.mubr.f32.gmra.mxu0 %v1041
    %v1114 = vpop.f32.mrf.mxu0
    %v1115 = vadd.f32 %v1034, %v1114
    %v1116 = vpop.f32.mrf.mxu0
    %1117 = vdwg.mxu0
    %1118 = vrot.lane.b32.xlu0 %v201, 112
    %v1119 = vpop.permute.xlu0 %1118
    %1120 = vrot.lane.b32.xlu0 %v287, 112
    %v1121 = vpop.permute.xlu0 %1120
    %v1122 = vsel %vm299, %v1119, 0
    %v1124 = vsel %vm299, %v1121, 0
    %1126 = vmatprep.subr.mxu0 0.0
    %1127 = vmatpush1.xpose.msra.mxu0 0.0
    %1128 = vmatprep.subr.mxu0 0.0
    %1129 = vmatpush1.xpose.msra.mxu0 0.0
    %1130 = vmatprep.subr.mxu0 0.0
    %1131 = vmatpush1.xpose.msra.mxu0 0.0
    %1132 = vmatprep.subr.mxu0 0.0
    %1133 = vmatpush1.xpose.msra.mxu0 0.0
    %1134 = vmatprep.subr.mxu0 0.0
    %1135 = vmatpush1.xpose.msra.mxu0 0.0
    %1136 = vmatprep.subr.mxu0 0.0
    %1137 = vmatpush1.xpose.msra.mxu0 0.0
    %1138 = vmatprep.subr.mxu0 0.0
    %1139 = vmatpush1.xpose.msra.mxu0 0.0
    %1140 = vmatprep.subr.mxu0 0.0
    %1141 = vmatpush1.xpose.msra.mxu0 0.0
    %1142 = vmatprep.subr.mxu0 0.0
    %1143 = vmatpush1.xpose.msra.mxu0 0.0
    %1144 = vmatprep.subr.mxu0 0.0
    %1145 = vmatpush1.xpose.msra.mxu0 0.0
    %1146 = vmatprep.subr.mxu0 0.0
    %1147 = vmatpush1.xpose.msra.mxu0 0.0
    %1148 = vmatprep.subr.mxu0 0.0
    %1149 = vmatpush1.xpose.msra.mxu0 0.0
    %1150 = vmatprep.subr.mxu0 0.0
    %1151 = vmatpush1.xpose.msra.mxu0 0.0
    %1152 = vmatprep.subr.mxu0 0.0
    %1153 = vmatpush1.xpose.msra.mxu0 0.0
    %1154 = vmatprep.subr.mxu0 0.0
    %1155 = vmatpush1.xpose.msra.mxu0 0.0
    %1156 = vmatprep.subr.mxu0 0.0
    %1157 = vmatpush1.xpose.msra.mxu0 %v1124
    %1158 = vmatprep.subr.mxu0 0.0
    %1159 = vmatpush2.xpose.msra.mxu0 0.0
    %1160 = vmatprep.subr.mxu0 0.0
    %1161 = vmatpush2.xpose.msra.mxu0 0.0
    %1162 = vmatprep.subr.mxu0 0.0
    %1163 = vmatpush2.xpose.msra.mxu0 0.0
    %1164 = vmatprep.subr.mxu0 0.0
    %1165 = vmatpush2.xpose.msra.mxu0 0.0
    %1166 = vmatprep.subr.mxu0 0.0
    %1167 = vmatpush2.xpose.msra.mxu0 0.0
    %1168 = vmatprep.subr.mxu0 0.0
    %1169 = vmatpush2.xpose.msra.mxu0 0.0
    %1170 = vmatprep.subr.mxu0 0.0
    %1171 = vmatpush2.xpose.msra.mxu0 0.0
    %1172 = vmatprep.subr.mxu0 0.0
    %1173 = vmatpush2.xpose.msra.mxu0 0.0
    %1174 = vmatprep.subr.mxu0 0.0
    %1175 = vmatpush2.xpose.msra.mxu0 0.0
    %1176 = vmatprep.subr.mxu0 0.0
    %1177 = vmatpush2.xpose.msra.mxu0 0.0
    %1178 = vmatprep.subr.mxu0 0.0
    %1179 = vmatpush2.xpose.msra.mxu0 0.0
    %1180 = vmatprep.subr.mxu0 0.0
    %1181 = vmatpush2.xpose.msra.mxu0 0.0
    %1182 = vmatprep.subr.mxu0 0.0
    %1183 = vmatpush2.xpose.msra.mxu0 0.0
    %1184 = vmatprep.subr.mxu0 0.0
    %1185 = vmatpush2.xpose.msra.mxu0 0.0
    %1186 = vmatprep.subr.mxu0 0.0
    %1187 = vmatpush2.xpose.msra.mxu0 0.0
    %1188 = vmatprep.subr.mxu0 0.0
    %1189 = vmatpush2.xpose.msra.mxu0 0.0
    %1190 = vmatprep.mubr.f32.mxu0 0.0
    %1191 = vmatmul.mubr.f32.gmra.mxu0 %v1122
    %v1192 = vpop.f32.mrf.mxu0
    %v1193 = vadd.f32 0.0, %v1192
    %v1194 = vpop.f32.mrf.mxu0
    %1195 = vdwg.mxu0
    %1196 = vrot.lane.b32.xlu0 %v202, 112
    %v1197 = vpop.permute.xlu0 %1196
    %1198 = vrot.lane.b32.xlu0 %v292, 112
    %v1199 = vpop.permute.xlu0 %1198
    %v1200 = vsel %vm299, %v1197, 0
    %v1202 = vsel %vm299, %v1199, 0
    %1204 = vmatprep.subr.mxu0 0.0
    %1205 = vmatpush1.xpose.msra.mxu0 0.0
    %1206 = vmatprep.subr.mxu0 0.0
    %1207 = vmatpush1.xpose.msra.mxu0 0.0
    %1208 = vmatprep.subr.mxu0 0.0
    %1209 = vmatpush1.xpose.msra.mxu0 0.0
    %1210 = vmatprep.subr.mxu0 0.0
    %1211 = vmatpush1.xpose.msra.mxu0 0.0
    %1212 = vmatprep.subr.mxu0 0.0
    %1213 = vmatpush1.xpose.msra.mxu0 0.0
    %1214 = vmatprep.subr.mxu0 0.0
    %1215 = vmatpush1.xpose.msra.mxu0 0.0
    %1216 = vmatprep.subr.mxu0 0.0
    %1217 = vmatpush1.xpose.msra.mxu0 0.0
    %1218 = vmatprep.subr.mxu0 0.0
    %1219 = vmatpush1.xpose.msra.mxu0 0.0
    %1220 = vmatprep.subr.mxu0 0.0
    %1221 = vmatpush1.xpose.msra.mxu0 0.0
    %1222 = vmatprep.subr.mxu0 0.0
    %1223 = vmatpush1.xpose.msra.mxu0 0.0
    %1224 = vmatprep.subr.mxu0 0.0
    %1225 = vmatpush1.xpose.msra.mxu0 0.0
    %1226 = vmatprep.subr.mxu0 0.0
    %1227 = vmatpush1.xpose.msra.mxu0 0.0
    %1228 = vmatprep.subr.mxu0 0.0
    %1229 = vmatpush1.xpose.msra.mxu0 0.0
    %1230 = vmatprep.subr.mxu0 0.0
    %1231 = vmatpush1.xpose.msra.mxu0 0.0
    %1232 = vmatprep.subr.mxu0 0.0
    %1233 = vmatpush1.xpose.msra.mxu0 0.0
    %1234 = vmatprep.subr.mxu0 0.0
    %1235 = vmatpush1.xpose.msra.mxu0 %v1202
    %1236 = vmatprep.subr.mxu0 0.0
    %1237 = vmatpush2.xpose.msra.mxu0 0.0
    %1238 = vmatprep.subr.mxu0 0.0
    %1239 = vmatpush2.xpose.msra.mxu0 0.0
    %1240 = vmatprep.subr.mxu0 0.0
    %1241 = vmatpush2.xpose.msra.mxu0 0.0
    %1242 = vmatprep.subr.mxu0 0.0
    %1243 = vmatpush2.xpose.msra.mxu0 0.0
    %1244 = vmatprep.subr.mxu0 0.0
    %1245 = vmatpush2.xpose.msra.mxu0 0.0
    %1246 = vmatprep.subr.mxu0 0.0
    %1247 = vmatpush2.xpose.msra.mxu0 0.0
    %1248 = vmatprep.subr.mxu0 0.0
    %1249 = vmatpush2.xpose.msra.mxu0 0.0
    %1250 = vmatprep.subr.mxu0 0.0
    %1251 = vmatpush2.xpose.msra.mxu0 0.0
    %1252 = vmatprep.subr.mxu0 0.0
    %1253 = vmatpush2.xpose.msra.mxu0 0.0
    %1254 = vmatprep.subr.mxu0 0.0
    %1255 = vmatpush2.xpose.msra.mxu0 0.0
    %1256 = vmatprep.subr.mxu0 0.0
    %1257 = vmatpush2.xpose.msra.mxu0 0.0
    %1258 = vmatprep.subr.mxu0 0.0
    %1259 = vmatpush2.xpose.msra.mxu0 0.0
    %1260 = vmatprep.subr.mxu0 0.0
    %1261 = vmatpush2.xpose.msra.mxu0 0.0
    %1262 = vmatprep.subr.mxu0 0.0
    %1263 = vmatpush2.xpose.msra.mxu0 0.0
    %1264 = vmatprep.subr.mxu0 0.0
    %1265 = vmatpush2.xpose.msra.mxu0 0.0
    %1266 = vmatprep.subr.mxu0 0.0
    %1267 = vmatpush2.xpose.msra.mxu0 0.0
    %1268 = vmatprep.mubr.f32.mxu0 0.0
    %1269 = vmatmul.mubr.f32.gmra.mxu0 %v1200
    %v1270 = vpop.f32.mrf.mxu0
    %v1271 = vadd.f32 0.0, %v1270
    %v1272 = vpop.f32.mrf.mxu0
    %1273 = vdwg.mxu0
    %v1274 = vsel %vm299, %v1193, -inf
    %1275 = vmax.xlane.f32.xlu0 %v1274
    %v1276 = vpop.xlane.xlu0 %1275
    %v1277 = vsel %vm299, %v1271, -inf
    %1278 = vmax.xlane.f32.xlu0 %v1277
    %v1279 = vpop.xlane.xlu0 %1278
    %v1280 = vsub.f32 %v1193, %v1276
    %v1281 = vsub.f32 %v1271, %v1279
    %v1282 = vmul.f32 %v1280, 1.442695
    %v1283 = vpow.pop %v1282
    %v1284 = vmul.f32 %v1281, 1.442695
    %v1285 = vpow.pop %v1284
    %v1286 = vsel %vm299, %v1283, 0.0
    %1287 = vadd.xlane.f32.xlu0 %v1286
    %v1288 = vpop.xlane.xlu0 %1287
    %v1289 = vsel %vm299, %v1285, 0.0
    %1290 = vadd.xlane.f32.xlu0 %v1289
    %v1291 = vpop.xlane.xlu0 %1290
    %v1292 = vrcp.pop %v1288
    %v1293 = vrcp.pop %v1291
    %v1294 = vmul.f32 %v1283, %v1292
    %v1295 = vmul.f32 %v1285, %v1293
    %1296 = vrot.lane.b32.xlu0 %v287, 80
    %v1297 = vpop.permute.xlu0 %1296
    %v1300 = vsel %vm299, %v1294, 0
    %1302 = vmatprep.subr.mxu0 0.0
    %1303 = vmatpush1.msra.mxu0 0.0
    %1304 = vmatprep.subr.mxu0 0.0
    %1305 = vmatpush1.msra.mxu0 0.0
    %1306 = vmatprep.subr.mxu0 0.0
    %1307 = vmatpush1.msra.mxu0 0.0
    %1308 = vmatprep.subr.mxu0 0.0
    %1309 = vmatpush1.msra.mxu0 0.0
    %1310 = vmatprep.subr.mxu0 0.0
    %1311 = vmatpush1.msra.mxu0 0.0
    %1312 = vmatprep.subr.mxu0 0.0
    %1313 = vmatpush1.msra.mxu0 0.0
    %1314 = vmatprep.subr.mxu0 0.0
    %1315 = vmatpush1.msra.mxu0 0.0
    %1316 = vmatprep.subr.mxu0 0.0
    %1317 = vmatpush1.msra.mxu0 0.0
    %1318 = vmatprep.subr.mxu0 0.0
    %1319 = vmatpush1.msra.mxu0 0.0
    %1320 = vmatprep.subr.mxu0 0.0
    %1321 = vmatpush1.msra.mxu0 0.0
    %1322 = vmatprep.subr.mxu0 0.0
    %1323 = vmatpush1.msra.mxu0 0.0
    %1324 = vmatprep.subr.mxu0 0.0
    %1325 = vmatpush1.msra.mxu0 0.0
    %1326 = vmatprep.subr.mxu0 0.0
    %1327 = vmatpush1.msra.mxu0 0.0
    %1328 = vmatprep.subr.mxu0 0.0
    %1329 = vmatpush1.msra.mxu0 0.0
    %1330 = vmatprep.subr.mxu0 0.0
    %1331 = vmatpush1.msra.mxu0 0.0
    %1332 = vmatprep.subr.mxu0 0.0
    %1333 = vmatpush1.msra.mxu0 %v1297
    %1334 = vmatprep.subr.mxu0 0.0
    %1335 = vmatpush2.msra.mxu0 0.0
    %1336 = vmatprep.subr.mxu0 0.0
    %1337 = vmatpush2.msra.mxu0 0.0
    %1338 = vmatprep.subr.mxu0 0.0
    %1339 = vmatpush2.msra.mxu0 0.0
    %1340 = vmatprep.subr.mxu0 0.0
    %1341 = vmatpush2.msra.mxu0 0.0
    %1342 = vmatprep.subr.mxu0 0.0
    %1343 = vmatpush2.msra.mxu0 0.0
    %1344 = vmatprep.subr.mxu0 0.0
    %1345 = vmatpush2.msra.mxu0 0.0
    %1346 = vmatprep.subr.mxu0 0.0
    %1347 = vmatpush2.msra.mxu0 0.0
    %1348 = vmatprep.subr.mxu0 0.0
    %1349 = vmatpush2.msra.mxu0 0.0
    %1350 = vmatprep.subr.mxu0 0.0
    %1351 = vmatpush2.msra.mxu0 0.0
    %1352 = vmatprep.subr.mxu0 0.0
    %1353 = vmatpush2.msra.mxu0 0.0
    %1354 = vmatprep.subr.mxu0 0.0
    %1355 = vmatpush2.msra.mxu0 0.0
    %1356 = vmatprep.subr.mxu0 0.0
    %1357 = vmatpush2.msra.mxu0 0.0
    %1358 = vmatprep.subr.mxu0 0.0
    %1359 = vmatpush2.msra.mxu0 0.0
    %1360 = vmatprep.subr.mxu0 0.0
    %1361 = vmatpush2.msra.mxu0 0.0
    %1362 = vmatprep.subr.mxu0 0.0
    %1363 = vmatpush2.msra.mxu0 0.0
    %1364 = vmatprep.subr.mxu0 0.0
    %1365 = vmatpush2.msra.mxu0 0.0
    %1366 = vmatprep.mubr.f32.mxu0 0.0
    %1367 = vmatmul.mubr.f32.gmra.mxu0 %v1300
    %v1368 = vpop.f32.mrf.mxu0
    %v1369 = vadd.f32 0.0, %v1368
    %v1370 = vpop.f32.mrf.mxu0
    %1371 = vdwg.mxu0
    %1372 = vrot.lane.b32.xlu0 %v292, 80
    %v1373 = vpop.permute.xlu0 %1372
    %v1376 = vsel %vm299, %v1295, 0
    %1378 = vmatprep.subr.mxu0 0.0
    %1379 = vmatpush1.msra.mxu0 0.0
    %1380 = vmatprep.subr.mxu0 0.0
    %1381 = vmatpush1.msra.mxu0 0.0
    %1382 = vmatprep.subr.mxu0 0.0
    %1383 = vmatpush1.msra.mxu0 0.0
    %1384 = vmatprep.subr.mxu0 0.0
    %1385 = vmatpush1.msra.mxu0 0.0
    %1386 = vmatprep.subr.mxu0 0.0
    %1387 = vmatpush1.msra.mxu0 0.0
    %1388 = vmatprep.subr.mxu0 0.0
    %1389 = vmatpush1.msra.mxu0 0.0
    %1390 = vmatprep.subr.mxu0 0.0
    %1391 = vmatpush1.msra.mxu0 0.0
    %1392 = vmatprep.subr.mxu0 0.0
    %1393 = vmatpush1.msra.mxu0 0.0
    %1394 = vmatprep.subr.mxu0 0.0
    %1395 = vmatpush1.msra.mxu0 0.0
    %1396 = vmatprep.subr.mxu0 0.0
    %1397 = vmatpush1.msra.mxu0 0.0
    %1398 = vmatprep.subr.mxu0 0.0
    %1399 = vmatpush1.msra.mxu0 0.0
    %1400 = vmatprep.subr.mxu0 0.0
    %1401 = vmatpush1.msra.mxu0 0.0
    %1402 = vmatprep.subr.mxu0 0.0
    %1403 = vmatpush1.msra.mxu0 0.0
    %1404 = vmatprep.subr.mxu0 0.0
    %1405 = vmatpush1.msra.mxu0 0.0
    %1406 = vmatprep.subr.mxu0 0.0
    %1407 = vmatpush1.msra.mxu0 0.0
    %1408 = vmatprep.subr.mxu0 0.0
    %1409 = vmatpush1.msra.mxu0 %v1373
    %1410 = vmatprep.subr.mxu0 0.0
    %1411 = vmatpush2.msra.mxu0 0.0
    %1412 = vmatprep.subr.mxu0 0.0
    %1413 = vmatpush2.msra.mxu0 0.0
    %1414 = vmatprep.subr.mxu0 0.0
    %1415 = vmatpush2.msra.mxu0 0.0
    %1416 = vmatprep.subr.mxu0 0.0
    %1417 = vmatpush2.msra.mxu0 0.0
    %1418 = vmatprep.subr.mxu0 0.0
    %1419 = vmatpush2.msra.mxu0 0.0
    %1420 = vmatprep.subr.mxu0 0.0
    %1421 = vmatpush2.msra.mxu0 0.0
    %1422 = vmatprep.subr.mxu0 0.0
    %1423 = vmatpush2.msra.mxu0 0.0
    %1424 = vmatprep.subr.mxu0 0.0
    %1425 = vmatpush2.msra.mxu0 0.0
    %1426 = vmatprep.subr.mxu0 0.0
    %1427 = vmatpush2.msra.mxu0 0.0
    %1428 = vmatprep.subr.mxu0 0.0
    %1429 = vmatpush2.msra.mxu0 0.0
    %1430 = vmatprep.subr.mxu0 0.0
    %1431 = vmatpush2.msra.mxu0 0.0
    %1432 = vmatprep.subr.mxu0 0.0
    %1433 = vmatpush2.msra.mxu0 0.0
    %1434 = vmatprep.subr.mxu0 0.0
    %1435 = vmatpush2.msra.mxu0 0.0
    %1436 = vmatprep.subr.mxu0 0.0
    %1437 = vmatpush2.msra.mxu0 0.0
    %1438 = vmatprep.subr.mxu0 0.0
    %1439 = vmatpush2.msra.mxu0 0.0
    %1440 = vmatprep.subr.mxu0 0.0
    %1441 = vmatpush2.msra.mxu0 0.0
    %1442 = vmatprep.mubr.f32.mxu0 0.0
    %1443 = vmatmul.mubr.f32.gmra.mxu0 %v1376
    %v1444 = vpop.f32.mrf.mxu0
    %v1445 = vadd.f32 0.0, %v1444
    %v1446 = vpop.f32.mrf.mxu0
    %1447 = vdwg.mxu0
    %v1449 = vsel %vm299, %v1369, 0
    %v1452 = vsel %vm299, %v1445, 0
    %1454 = vmatprep.subr.mxu0 0.0
    %1455 = vmatpush1.msra.mxu0 0.0
    %1456 = vmatprep.subr.mxu0 0.0
    %1457 = vmatpush1.msra.mxu0 0.0
    %1458 = vmatprep.subr.mxu0 0.0
    %1459 = vmatpush1.msra.mxu0 0.0
    %1460 = vmatprep.subr.mxu0 0.0
    %1461 = vmatpush1.msra.mxu0 0.0
    %1462 = vmatprep.subr.mxu0 0.0
    %1463 = vmatpush1.msra.mxu0 0.0
    %1464 = vmatprep.subr.mxu0 0.0
    %1465 = vmatpush1.msra.mxu0 0.0
    %1466 = vmatprep.subr.mxu0 0.0
    %1467 = vmatpush1.msra.mxu0 0.0
    %1468 = vmatprep.subr.mxu0 0.0
    %1469 = vmatpush1.msra.mxu0 0.0
    %1470 = vmatprep.subr.mxu0 0.0
    %1471 = vmatpush1.msra.mxu0 0.0
    %1472 = vmatprep.subr.mxu0 0.0
    %1473 = vmatpush1.msra.mxu0 0.0
    %1474 = vmatprep.subr.mxu0 0.0
    %1475 = vmatpush1.msra.mxu0 0.0
    %1476 = vmatprep.subr.mxu0 0.0
    %1477 = vmatpush1.msra.mxu0 0.0
    %1478 = vmatprep.subr.mxu0 0.0
    %1479 = vmatpush1.msra.mxu0 0.0
    %1480 = vmatprep.subr.mxu0 0.0
    %1481 = vmatpush1.msra.mxu0 0.0
    %1482 = vmatprep.subr.mxu0 0.0
    %1483 = vmatpush1.msra.mxu0 0.0
    %1484 = vmatprep.subr.mxu0 0.0
    %1485 = vmatpush1.msra.mxu0 %v297
    %1486 = vmatprep.subr.mxu0 0.0
    %1487 = vmatpush2.msra.mxu0 0.0
    %1488 = vmatprep.subr.mxu0 0.0
    %1489 = vmatpush2.msra.mxu0 0.0
    %1490 = vmatprep.subr.mxu0 0.0
    %1491 = vmatpush2.msra.mxu0 0.0
    %1492 = vmatprep.subr.mxu0 0.0
    %1493 = vmatpush2.msra.mxu0 0.0
    %1494 = vmatprep.subr.mxu0 0.0
    %1495 = vmatpush2.msra.mxu0 0.0
    %1496 = vmatprep.subr.mxu0 0.0
    %1497 = vmatpush2.msra.mxu0 0.0
    %1498 = vmatprep.subr.mxu0 0.0
    %1499 = vmatpush2.msra.mxu0 0.0
    %1500 = vmatprep.subr.mxu0 0.0
    %1501 = vmatpush2.msra.mxu0 0.0
    %1502 = vmatprep.subr.mxu0 0.0
    %1503 = vmatpush2.msra.mxu0 0.0
    %1504 = vmatprep.subr.mxu0 0.0
    %1505 = vmatpush2.msra.mxu0 0.0
    %1506 = vmatprep.subr.mxu0 0.0
    %1507 = vmatpush2.msra.mxu0 0.0
    %1508 = vmatprep.subr.mxu0 0.0
    %1509 = vmatpush2.msra.mxu0 0.0
    %1510 = vmatprep.subr.mxu0 0.0
    %1511 = vmatpush2.msra.mxu0 0.0
    %1512 = vmatprep.subr.mxu0 0.0
    %1513 = vmatpush2.msra.mxu0 0.0
    %1514 = vmatprep.subr.mxu0 0.0
    %1515 = vmatpush2.msra.mxu0 0.0
    %1516 = vmatprep.subr.mxu0 0.0
    %1517 = vmatpush2.msra.mxu0 0.0
    %1518 = vmatprep.mubr.f32.mxu0 0.0
    %1519 = vmatmul.mubr.f32.gmra.mxu0 %v1449
    %v1520 = vpop.f32.mrf.mxu0
    %v1521 = vadd.f32 0.0, %v1520
    %v1522 = vpop.f32.mrf.mxu0
    %1523 = vmatprep.mubr.f32.mxu0 0.0
    %1524 = vmatmul.mubr.f32.gmra.mxu0 %v1452
    %v1525 = vpop.f32.mrf.mxu0
    %v1526 = vadd.f32 0.0, %v1525
    %v1527 = vpop.f32.mrf.mxu0
    %1528 = vdwg.mxu0
    %v1529 = vadd.f32 %v1110, %v1521
    %v1530 = vadd.f32 %v1115, %v1526
    %1531 = vrot.lane.b32.xlu0 %v201, 104
    %v1532 = vpop.permute.xlu0 %1531
    %1533 = vrot.lane.b32.xlu0 %v287, 104
    %v1534 = vpop.permute.xlu0 %1533
    %v1535 = vsel %vm299, %v1532, 0
    %v1537 = vsel %vm299, %v1534, 0
    %1539 = vmatprep.subr.mxu0 0.0
    %1540 = vmatpush1.xpose.msra.mxu0 0.0
    %1541 = vmatprep.subr.mxu0 0.0
    %1542 = vmatpush1.xpose.msra.mxu0 0.0
    %1543 = vmatprep.subr.mxu0 0.0
    %1544 = vmatpush1.xpose.msra.mxu0 0.0
    %1545 = vmatprep.subr.mxu0 0.0
    %1546 = vmatpush1.xpose.msra.mxu0 0.0
    %1547 = vmatprep.subr.mxu0 0.0
    %1548 = vmatpush1.xpose.msra.mxu0 0.0
    %1549 = vmatprep.subr.mxu0 0.0
    %1550 = vmatpush1.xpose.msra.mxu0 0.0
    %1551 = vmatprep.subr.mxu0 0.0
    %1552 = vmatpush1.xpose.msra.mxu0 0.0
    %1553 = vmatprep.subr.mxu0 0.0
    %1554 = vmatpush1.xpose.msra.mxu0 0.0
    %1555 = vmatprep.subr.mxu0 0.0
    %1556 = vmatpush1.xpose.msra.mxu0 0.0
    %1557 = vmatprep.subr.mxu0 0.0
    %1558 = vmatpush1.xpose.msra.mxu0 0.0
    %1559 = vmatprep.subr.mxu0 0.0
    %1560 = vmatpush1.xpose.msra.mxu0 0.0
    %1561 = vmatprep.subr.mxu0 0.0
    %1562 = vmatpush1.xpose.msra.mxu0 0.0
    %1563 = vmatprep.subr.mxu0 0.0
    %1564 = vmatpush1.xpose.msra.mxu0 0.0
    %1565 = vmatprep.subr.mxu0 0.0
    %1566 = vmatpush1.xpose.msra.mxu0 0.0
    %1567 = vmatprep.subr.mxu0 0.0
    %1568 = vmatpush1.xpose.msra.mxu0 0.0
    %1569 = vmatprep.subr.mxu0 0.0
    %1570 = vmatpush1.xpose.msra.mxu0 %v1537
    %1571 = vmatprep.subr.mxu0 0.0
    %1572 = vmatpush2.xpose.msra.mxu0 0.0
    %1573 = vmatprep.subr.mxu0 0.0
    %1574 = vmatpush2.xpose.msra.mxu0 0.0
    %1575 = vmatprep.subr.mxu0 0.0
    %1576 = vmatpush2.xpose.msra.mxu0 0.0
    %1577 = vmatprep.subr.mxu0 0.0
    %1578 = vmatpush2.xpose.msra.mxu0 0.0
    %1579 = vmatprep.subr.mxu0 0.0
    %1580 = vmatpush2.xpose.msra.mxu0 0.0
    %1581 = vmatprep.subr.mxu0 0.0
    %1582 = vmatpush2.xpose.msra.mxu0 0.0
    %1583 = vmatprep.subr.mxu0 0.0
    %1584 = vmatpush2.xpose.msra.mxu0 0.0
    %1585 = vmatprep.subr.mxu0 0.0
    %1586 = vmatpush2.xpose.msra.mxu0 0.0
    %1587 = vmatprep.subr.mxu0 0.0
    %1588 = vmatpush2.xpose.msra.mxu0 0.0
    %1589 = vmatprep.subr.mxu0 0.0
    %1590 = vmatpush2.xpose.msra.mxu0 0.0
    %1591 = vmatprep.subr.mxu0 0.0
    %1592 = vmatpush2.xpose.msra.mxu0 0.0
    %1593 = vmatprep.subr.mxu0 0.0
    %1594 = vmatpush2.xpose.msra.mxu0 0.0
    %1595 = vmatprep.subr.mxu0 0.0
    %1596 = vmatpush2.xpose.msra.mxu0 0.0
    %1597 = vmatprep.subr.mxu0 0.0
    %1598 = vmatpush2.xpose.msra.mxu0 0.0
    %1599 = vmatprep.subr.mxu0 0.0
    %1600 = vmatpush2.xpose.msra.mxu0 0.0
    %1601 = vmatprep.subr.mxu0 0.0
    %1602 = vmatpush2.xpose.msra.mxu0 0.0
    %1603 = vmatprep.mubr.f32.mxu0 0.0
    %1604 = vmatmul.mubr.f32.gmra.mxu0 %v1535
    %v1605 = vpop.f32.mrf.mxu0
    %v1606 = vadd.f32 0.0, %v1605
    %v1607 = vpop.f32.mrf.mxu0
    %1608 = vdwg.mxu0
    %1609 = vrot.lane.b32.xlu0 %v202, 104
    %v1610 = vpop.permute.xlu0 %1609
    %1611 = vrot.lane.b32.xlu0 %v292, 104
    %v1612 = vpop.permute.xlu0 %1611
    %v1613 = vsel %vm299, %v1610, 0
    %v1615 = vsel %vm299, %v1612, 0
    %1617 = vmatprep.subr.mxu0 0.0
    %1618 = vmatpush1.xpose.msra.mxu0 0.0
    %1619 = vmatprep.subr.mxu0 0.0
    %1620 = vmatpush1.xpose.msra.mxu0 0.0
    %1621 = vmatprep.subr.mxu0 0.0
    %1622 = vmatpush1.xpose.msra.mxu0 0.0
    %1623 = vmatprep.subr.mxu0 0.0
    %1624 = vmatpush1.xpose.msra.mxu0 0.0
    %1625 = vmatprep.subr.mxu0 0.0
    %1626 = vmatpush1.xpose.msra.mxu0 0.0
    %1627 = vmatprep.subr.mxu0 0.0
    %1628 = vmatpush1.xpose.msra.mxu0 0.0
    %1629 = vmatprep.subr.mxu0 0.0
    %1630 = vmatpush1.xpose.msra.mxu0 0.0
    %1631 = vmatprep.subr.mxu0 0.0
    %1632 = vmatpush1.xpose.msra.mxu0 0.0
    %1633 = vmatprep.subr.mxu0 0.0
    %1634 = vmatpush1.xpose.msra.mxu0 0.0
    %1635 = vmatprep.subr.mxu0 0.0
    %1636 = vmatpush1.xpose.msra.mxu0 0.0
    %1637 = vmatprep.subr.mxu0 0.0
    %1638 = vmatpush1.xpose.msra.mxu0 0.0
    %1639 = vmatprep.subr.mxu0 0.0
    %1640 = vmatpush1.xpose.msra.mxu0 0.0
    %1641 = vmatprep.subr.mxu0 0.0
    %1642 = vmatpush1.xpose.msra.mxu0 0.0
    %1643 = vmatprep.subr.mxu0 0.0
    %1644 = vmatpush1.xpose.msra.mxu0 0.0
    %1645 = vmatprep.subr.mxu0 0.0
    %1646 = vmatpush1.xpose.msra.mxu0 0.0
    %1647 = vmatprep.subr.mxu0 0.0
    %1648 = vmatpush1.xpose.msra.mxu0 %v1615
    %1649 = vmatprep.subr.mxu0 0.0
    %1650 = vmatpush2.xpose.msra.mxu0 0.0
    %1651 = vmatprep.subr.mxu0 0.0
    %1652 = vmatpush2.xpose.msra.mxu0 0.0
    %1653 = vmatprep.subr.mxu0 0.0
    %1654 = vmatpush2.xpose.msra.mxu0 0.0
    %1655 = vmatprep.subr.mxu0 0.0
    %1656 = vmatpush2.xpose.msra.mxu0 0.0
    %1657 = vmatprep.subr.mxu0 0.0
    %1658 = vmatpush2.xpose.msra.mxu0 0.0
    %1659 = vmatprep.subr.mxu0 0.0
    %1660 = vmatpush2.xpose.msra.mxu0 0.0
    %1661 = vmatprep.subr.mxu0 0.0
    %1662 = vmatpush2.xpose.msra.mxu0 0.0
    %1663 = vmatprep.subr.mxu0 0.0
    %1664 = vmatpush2.xpose.msra.mxu0 0.0
    %1665 = vmatprep.subr.mxu0 0.0
    %1666 = vmatpush2.xpose.msra.mxu0 0.0
    %1667 = vmatprep.subr.mxu0 0.0
    %1668 = vmatpush2.xpose.msra.mxu0 0.0
    %1669 = vmatprep.subr.mxu0 0.0
    %1670 = vmatpush2.xpose.msra.mxu0 0.0
    %1671 = vmatprep.subr.mxu0 0.0
    %1672 = vmatpush2.xpose.msra.mxu0 0.0
    %1673 = vmatprep.subr.mxu0 0.0
    %1674 = vmatpush2.xpose.msra.mxu0 0.0
    %1675 = vmatprep.subr.mxu0 0.0
    %1676 = vmatpush2.xpose.msra.mxu0 0.0
    %1677 = vmatprep.subr.mxu0 0.0
    %1678 = vmatpush2.xpose.msra.mxu0 0.0
    %1679 = vmatprep.subr.mxu0 0.0
    %1680 = vmatpush2.xpose.msra.mxu0 0.0
    %1681 = vmatprep.mubr.f32.mxu0 0.0
    %1682 = vmatmul.mubr.f32.gmra.mxu0 %v1613
    %v1683 = vpop.f32.mrf.mxu0
    %v1684 = vadd.f32 0.0, %v1683
    %v1685 = vpop.f32.mrf.mxu0
    %1686 = vdwg.mxu0
    %v1687 = vsel %vm299, %v1606, -inf
    %1688 = vmax.xlane.f32.xlu0 %v1687
    %v1689 = vpop.xlane.xlu0 %1688
    %v1690 = vsel %vm299, %v1684, -inf
    %1691 = vmax.xlane.f32.xlu0 %v1690
    %v1692 = vpop.xlane.xlu0 %1691
    %v1693 = vsub.f32 %v1606, %v1689
    %v1694 = vsub.f32 %v1684, %v1692
    %v1695 = vmul.f32 %v1693, 1.442695
    %v1696 = vpow.pop %v1695
    %v1697 = vmul.f32 %v1694, 1.442695
    %v1698 = vpow.pop %v1697
    %v1699 = vsel %vm299, %v1696, 0.0
    %1700 = vadd.xlane.f32.xlu0 %v1699
    %v1701 = vpop.xlane.xlu0 %1700
    %v1702 = vsel %vm299, %v1698, 0.0
    %1703 = vadd.xlane.f32.xlu0 %v1702
    %v1704 = vpop.xlane.xlu0 %1703
    %v1705 = vrcp.pop %v1701
    %v1706 = vrcp.pop %v1704
    %v1707 = vmul.f32 %v1696, %v1705
    %v1708 = vmul.f32 %v1698, %v1706
    %1709 = vrot.lane.b32.xlu0 %v287, 72
    %v1710 = vpop.permute.xlu0 %1709
    %v1713 = vsel %vm299, %v1707, 0
    %1715 = vmatprep.subr.mxu0 0.0
    %1716 = vmatpush1.msra.mxu0 0.0
    %1717 = vmatprep.subr.mxu0 0.0
    %1718 = vmatpush1.msra.mxu0 0.0
    %1719 = vmatprep.subr.mxu0 0.0
    %1720 = vmatpush1.msra.mxu0 0.0
    %1721 = vmatprep.subr.mxu0 0.0
    %1722 = vmatpush1.msra.mxu0 0.0
    %1723 = vmatprep.subr.mxu0 0.0
    %1724 = vmatpush1.msra.mxu0 0.0
    %1725 = vmatprep.subr.mxu0 0.0
    %1726 = vmatpush1.msra.mxu0 0.0
    %1727 = vmatprep.subr.mxu0 0.0
    %1728 = vmatpush1.msra.mxu0 0.0
    %1729 = vmatprep.subr.mxu0 0.0
    %1730 = vmatpush1.msra.mxu0 0.0
    %1731 = vmatprep.subr.mxu0 0.0
    %1732 = vmatpush1.msra.mxu0 0.0
    %1733 = vmatprep.subr.mxu0 0.0
    %1734 = vmatpush1.msra.mxu0 0.0
    %1735 = vmatprep.subr.mxu0 0.0
    %1736 = vmatpush1.msra.mxu0 0.0
    %1737 = vmatprep.subr.mxu0 0.0
    %1738 = vmatpush1.msra.mxu0 0.0
    %1739 = vmatprep.subr.mxu0 0.0
    %1740 = vmatpush1.msra.mxu0 0.0
    %1741 = vmatprep.subr.mxu0 0.0
    %1742 = vmatpush1.msra.mxu0 0.0
    %1743 = vmatprep.subr.mxu0 0.0
    %1744 = vmatpush1.msra.mxu0 0.0
    %1745 = vmatprep.subr.mxu0 0.0
    %1746 = vmatpush1.msra.mxu0 %v1710
    %1747 = vmatprep.subr.mxu0 0.0
    %1748 = vmatpush2.msra.mxu0 0.0
    %1749 = vmatprep.subr.mxu0 0.0
    %1750 = vmatpush2.msra.mxu0 0.0
    %1751 = vmatprep.subr.mxu0 0.0
    %1752 = vmatpush2.msra.mxu0 0.0
    %1753 = vmatprep.subr.mxu0 0.0
    %1754 = vmatpush2.msra.mxu0 0.0
    %1755 = vmatprep.subr.mxu0 0.0
    %1756 = vmatpush2.msra.mxu0 0.0
    %1757 = vmatprep.subr.mxu0 0.0
    %1758 = vmatpush2.msra.mxu0 0.0
    %1759 = vmatprep.subr.mxu0 0.0
    %1760 = vmatpush2.msra.mxu0 0.0
    %1761 = vmatprep.subr.mxu0 0.0
    %1762 = vmatpush2.msra.mxu0 0.0
    %1763 = vmatprep.subr.mxu0 0.0
    %1764 = vmatpush2.msra.mxu0 0.0
    %1765 = vmatprep.subr.mxu0 0.0
    %1766 = vmatpush2.msra.mxu0 0.0
    %1767 = vmatprep.subr.mxu0 0.0
    %1768 = vmatpush2.msra.mxu0 0.0
    %1769 = vmatprep.subr.mxu0 0.0
    %1770 = vmatpush2.msra.mxu0 0.0
    %1771 = vmatprep.subr.mxu0 0.0
    %1772 = vmatpush2.msra.mxu0 0.0
    %1773 = vmatprep.subr.mxu0 0.0
    %1774 = vmatpush2.msra.mxu0 0.0
    %1775 = vmatprep.subr.mxu0 0.0
    %1776 = vmatpush2.msra.mxu0 0.0
    %1777 = vmatprep.subr.mxu0 0.0
    %1778 = vmatpush2.msra.mxu0 0.0
    %1779 = vmatprep.mubr.f32.mxu0 0.0
    %1780 = vmatmul.mubr.f32.gmra.mxu0 %v1713
    %v1781 = vpop.f32.mrf.mxu0
    %v1782 = vadd.f32 0.0, %v1781
    %v1783 = vpop.f32.mrf.mxu0
    %1784 = vdwg.mxu0
    %1785 = vrot.lane.b32.xlu0 %v292, 72
    %v1786 = vpop.permute.xlu0 %1785
    %v1789 = vsel %vm299, %v1708, 0
    %1791 = vmatprep.subr.mxu0 0.0
    %1792 = vmatpush1.msra.mxu0 0.0
    %1793 = vmatprep.subr.mxu0 0.0
    %1794 = vmatpush1.msra.mxu0 0.0
    %1795 = vmatprep.subr.mxu0 0.0
    %1796 = vmatpush1.msra.mxu0 0.0
    %1797 = vmatprep.subr.mxu0 0.0
    %1798 = vmatpush1.msra.mxu0 0.0
    %1799 = vmatprep.subr.mxu0 0.0
    %1800 = vmatpush1.msra.mxu0 0.0
    %1801 = vmatprep.subr.mxu0 0.0
    %1802 = vmatpush1.msra.mxu0 0.0
    %1803 = vmatprep.subr.mxu0 0.0
    %1804 = vmatpush1.msra.mxu0 0.0
    %1805 = vmatprep.subr.mxu0 0.0
    %1806 = vmatpush1.msra.mxu0 0.0
    %1807 = vmatprep.subr.mxu0 0.0
    %1808 = vmatpush1.msra.mxu0 0.0
    %1809 = vmatprep.subr.mxu0 0.0
    %1810 = vmatpush1.msra.mxu0 0.0
    %1811 = vmatprep.subr.mxu0 0.0
    %1812 = vmatpush1.msra.mxu0 0.0
    %1813 = vmatprep.subr.mxu0 0.0
    %1814 = vmatpush1.msra.mxu0 0.0
    %1815 = vmatprep.subr.mxu0 0.0
    %1816 = vmatpush1.msra.mxu0 0.0
    %1817 = vmatprep.subr.mxu0 0.0
    %1818 = vmatpush1.msra.mxu0 0.0
    %1819 = vmatprep.subr.mxu0 0.0
    %1820 = vmatpush1.msra.mxu0 0.0
    %1821 = vmatprep.subr.mxu0 0.0
    %1822 = vmatpush1.msra.mxu0 %v1786
    %1823 = vmatprep.subr.mxu0 0.0
    %1824 = vmatpush2.msra.mxu0 0.0
    %1825 = vmatprep.subr.mxu0 0.0
    %1826 = vmatpush2.msra.mxu0 0.0
    %1827 = vmatprep.subr.mxu0 0.0
    %1828 = vmatpush2.msra.mxu0 0.0
    %1829 = vmatprep.subr.mxu0 0.0
    %1830 = vmatpush2.msra.mxu0 0.0
    %1831 = vmatprep.subr.mxu0 0.0
    %1832 = vmatpush2.msra.mxu0 0.0
    %1833 = vmatprep.subr.mxu0 0.0
    %1834 = vmatpush2.msra.mxu0 0.0
    %1835 = vmatprep.subr.mxu0 0.0
    %1836 = vmatpush2.msra.mxu0 0.0
    %1837 = vmatprep.subr.mxu0 0.0
    %1838 = vmatpush2.msra.mxu0 0.0
    %1839 = vmatprep.subr.mxu0 0.0
    %1840 = vmatpush2.msra.mxu0 0.0
    %1841 = vmatprep.subr.mxu0 0.0
    %1842 = vmatpush2.msra.mxu0 0.0
    %1843 = vmatprep.subr.mxu0 0.0
    %1844 = vmatpush2.msra.mxu0 0.0
    %1845 = vmatprep.subr.mxu0 0.0
    %1846 = vmatpush2.msra.mxu0 0.0
    %1847 = vmatprep.subr.mxu0 0.0
    %1848 = vmatpush2.msra.mxu0 0.0
    %1849 = vmatprep.subr.mxu0 0.0
    %1850 = vmatpush2.msra.mxu0 0.0
    %1851 = vmatprep.subr.mxu0 0.0
    %1852 = vmatpush2.msra.mxu0 0.0
    %1853 = vmatprep.subr.mxu0 0.0
    %1854 = vmatpush2.msra.mxu0 0.0
    %1855 = vmatprep.mubr.f32.mxu0 0.0
    %1856 = vmatmul.mubr.f32.gmra.mxu0 %v1789
    %v1857 = vpop.f32.mrf.mxu0
    %v1858 = vadd.f32 0.0, %v1857
    %v1859 = vpop.f32.mrf.mxu0
    %1860 = vdwg.mxu0
    %v1862 = vsel %vm299, %v1782, 0
    %v1865 = vsel %vm299, %v1858, 0
    %1867 = vmatprep.subr.mxu0 0.0
    %1868 = vmatpush1.msra.mxu0 0.0
    %1869 = vmatprep.subr.mxu0 0.0
    %1870 = vmatpush1.msra.mxu0 0.0
    %1871 = vmatprep.subr.mxu0 0.0
    %1872 = vmatpush1.msra.mxu0 0.0
    %1873 = vmatprep.subr.mxu0 0.0
    %1874 = vmatpush1.msra.mxu0 0.0
    %1875 = vmatprep.subr.mxu0 0.0
    %1876 = vmatpush1.msra.mxu0 0.0
    %1877 = vmatprep.subr.mxu0 0.0
    %1878 = vmatpush1.msra.mxu0 0.0
    %1879 = vmatprep.subr.mxu0 0.0
    %1880 = vmatpush1.msra.mxu0 0.0
    %1881 = vmatprep.subr.mxu0 0.0
    %1882 = vmatpush1.msra.mxu0 0.0
    %1883 = vmatprep.subr.mxu0 0.0
    %1884 = vmatpush1.msra.mxu0 0.0
    %1885 = vmatprep.subr.mxu0 0.0
    %1886 = vmatpush1.msra.mxu0 0.0
    %1887 = vmatprep.subr.mxu0 0.0
    %1888 = vmatpush1.msra.mxu0 0.0
    %1889 = vmatprep.subr.mxu0 0.0
    %1890 = vmatpush1.msra.mxu0 0.0
    %1891 = vmatprep.subr.mxu0 0.0
    %1892 = vmatpush1.msra.mxu0 0.0
    %1893 = vmatprep.subr.mxu0 0.0
    %1894 = vmatpush1.msra.mxu0 0.0
    %1895 = vmatprep.subr.mxu0 0.0
    %1896 = vmatpush1.msra.mxu0 0.0
    %1897 = vmatprep.subr.mxu0 0.0
    %1898 = vmatpush1.msra.mxu0 %v298
    %1899 = vmatprep.subr.mxu0 0.0
    %1900 = vmatpush2.msra.mxu0 0.0
    %1901 = vmatprep.subr.mxu0 0.0
    %1902 = vmatpush2.msra.mxu0 0.0
    %1903 = vmatprep.subr.mxu0 0.0
    %1904 = vmatpush2.msra.mxu0 0.0
    %1905 = vmatprep.subr.mxu0 0.0
    %1906 = vmatpush2.msra.mxu0 0.0
    %1907 = vmatprep.subr.mxu0 0.0
    %1908 = vmatpush2.msra.mxu0 0.0
    %1909 = vmatprep.subr.mxu0 0.0
    %1910 = vmatpush2.msra.mxu0 0.0
    %1911 = vmatprep.subr.mxu0 0.0
    %1912 = vmatpush2.msra.mxu0 0.0
    %1913 = vmatprep.subr.mxu0 0.0
    %1914 = vmatpush2.msra.mxu0 0.0
    %1915 = vmatprep.subr.mxu0 0.0
    %1916 = vmatpush2.msra.mxu0 0.0
    %1917 = vmatprep.subr.mxu0 0.0
    %1918 = vmatpush2.msra.mxu0 0.0
    %1919 = vmatprep.subr.mxu0 0.0
    %1920 = vmatpush2.msra.mxu0 0.0
    %1921 = vmatprep.subr.mxu0 0.0
    %1922 = vmatpush2.msra.mxu0 0.0
    %1923 = vmatprep.subr.mxu0 0.0
    %1924 = vmatpush2.msra.mxu0 0.0
    %1925 = vmatprep.subr.mxu0 0.0
    %1926 = vmatpush2.msra.mxu0 0.0
    %1927 = vmatprep.subr.mxu0 0.0
    %1928 = vmatpush2.msra.mxu0 0.0
    %1929 = vmatprep.subr.mxu0 0.0
    %1930 = vmatpush2.msra.mxu0 0.0
    %1931 = vmatprep.mubr.f32.mxu0 0.0
    %1932 = vmatmul.mubr.f32.gmra.mxu0 %v1862
    %v1933 = vpop.f32.mrf.mxu0
    %v1934 = vadd.f32 0.0, %v1933
    %v1935 = vpop.f32.mrf.mxu0
    %1936 = vmatprep.mubr.f32.mxu0 0.0
    %1937 = vmatmul.mubr.f32.gmra.mxu0 %v1865
    %v1938 = vpop.f32.mrf.mxu0
    %v1939 = vadd.f32 0.0, %v1938
    %v1940 = vpop.f32.mrf.mxu0
    %1941 = vdwg.mxu0
    %v1942 = vadd.f32 %v1529, %v1934
    %v1943 = vadd.f32 %v1530, %v1939
    %v1944 = vld [vmem:[%s7] sm:$0x1]
    %v1946 = vlaneseq
    %v1947 = vshrl.u32 %v1946, 7
    %v1948 = vsub.s32 0, %v1947
    %v1949 = vrot.slane %v1944, %v1948
    %v1951 = vadd.f32 %v1942, %v1949
    %v1952 = vadd.f32 %v1943, %v1949
    %v1953 = vadd.f32 %v1951, %v104
    %v1954 = vadd.f32 %v1952, %v105
    %v1955 = vsel %vm119, %v1953, 0.0
    %1956 = vadd.xlane.f32.xlu0 %v1955
    %v1957 = vpop.xlane.xlu0 %1956
    %v1958 = vsel %vm119, %v1954, 0.0
    %1959 = vadd.xlane.f32.xlu0 %v1958
    %v1960 = vpop.xlane.xlu0 %1959
    %v1961 = vrcp.pop 32.0
    %v1962 = vmul.f32 %v1957, %v1961
    %v1963 = vmul.f32 %v1960, %v1961
    %v1964 = vsub.f32 %v1953, %v1962
    %v1965 = vsub.f32 %v1954, %v1963
    %v1966 = vmul.f32 %v1964, %v1964
    %v1967 = vmul.f32 %v1965, %v1965
    %v1968 = vsel %vm119, %v1966, 0.0
    %1969 = vadd.xlane.f32.xlu0 %v1968
    %v1970 = vpop.xlane.xlu0 %1969
    %v1971 = vsel %vm119, %v1967, 0.0
    %1972 = vadd.xlane.f32.xlu0 %v1971
    %v1973 = vpop.xlane.xlu0 %1972
    %v1974 = vmul.f32 %v1970, %v1961
    %v1975 = vmul.f32 %v1973, %v1961
    %v1976 = vadd.f32 %v1974, 1e-06
    %v1977 = vadd.f32 %v1975, 1e-06
    %v1978 = vrsqrt.pop %v1976
    %v1979 = vrsqrt.pop %v1977
    %v1980 = vmul.f32 %v1964, %v1978
    %v1981 = vmul.f32 %v1965, %v1979
    %v1982 = vld [vmem:[%s8] sm:$0x1]
    %v1984 = vlaneseq
    %v1985 = vshrl.u32 %v1984, 7
    %v1986 = vsub.s32 0, %v1985
    %v1987 = vrot.slane %v1982, %v1986
    %v1989 = vmul.f32 %v1980, %v1987
    %v1990 = vmul.f32 %v1981, %v1987
    %v1991 = vld [vmem:[%s9] sm:$0x1]
    %v1993 = vlaneseq
    %v1994 = vshrl.u32 %v1993, 7
    %v1995 = vsub.s32 0, %v1994
    %v1996 = vrot.slane %v1991, %v1995
    %v1998 = vadd.f32 %v1989, %v1996
    %v1999 = vadd.f32 %v1990, %v1996
    %2000 = vst.msk [vmem:[#allocation11] sm:$0xff] %vm119, %v1998
    %2001 = vst.msk [vmem:[#allocation11 + $0x8] sm:$0xff] %vm119, %v1999
    // Predicated region
    $region62: #{tpu_custom_call.1} parent=1 // pred_check
      _
    $region63: #{tpu_custom_call.1} parent=1 // pred_check_branch
      %2003 = sbr.rel (0) target = $region65
    $region64: #{tpu_custom_call.1} parent=1 // pred_region
      %s2005 = ssub.s32 256, 256
      %2006 = vsyncadd [#allocation4], %s2005
      %s2007 = sshll.u32 [#allocation11], 4
      %s2008 = int_to_ptr.vmem [resolvable:$true] %s2007
      %2013 = dma.vmem_to_hbm [thread:$0]  %s2008, 256, %s10, [#allocation4], 128, 128, 8
    $region65: #{tpu_custom_call.1} parent=1 // pred_fallthru
      _
    // Predicated region
    $region66: #{tpu_custom_call.1} parent=1 // pred_check
      _
    $region67: #{tpu_custom_call.1} parent=1 // pred_check_branch
      %2015 = sbr.rel (0) target = $region69
    $region68: #{tpu_custom_call.1} parent=1 // pred_region
      %2016 = dma.done [#allocation4], 256
    $region69: #{tpu_custom_call.1} parent=1 // pred_fallthru
      _
    %2017 = vsyncpa [#allocation3], 1
    %2018 = vsyncpa [#allocation6], 1
    %2019 = vsyncpa [#allocation9], 1
    %2020 = vsyncpa [#allocation4], 1

</llo_original>
